<compile_context>
chip_gen: v5e
topology: v5e:2x2
jax: 0.10.0
libtpu: 0.0.40
codegen_flags: <defaults>
</compile_context>

<pallas_src>
import functools

import jax
import jax.numpy as jnp
from jax import lax
from jax.experimental import pallas as pl
from jax.experimental.pallas import tpu as pltpu

LANE = 128


def _round_up(x, m):
    return ((x + m - 1) // m) * m


# --------------------------------------------------------------------------- #
# Fused Pallas kernel (one batch image per grid step)
#
# Input activation layout ("parity" / space-to-depth form), flattened:
#   xp[n, (2*ph + pw) * (ho*wo) + i*wo + j, c] = x_nhwc[n, 2*i + ph, 2*j + pw, c]
# so every stride-2 tap is a plain (optionally shifted) parity image.
# --------------------------------------------------------------------------- #
def _fused_block_kernel(xp_ref, w1_ref, b1_ref, wc_ref, bc_ref, w3_ref, b3_ref,
                        wd_ref, bd_ref, final_ref, added_ref, *, ho, wo):
    hw = ho * wo
    cin_p = xp_ref.shape[-1]
    cmid_p = w1_ref.shape[-1]

    # ---- in_bottleneck: 1x1 conv + ReLU on all 4 parity images at once ----- #
    x_all = xp_ref[0]                                               # (4*hw, Cin)
    h1 = jnp.dot(x_all, w1_ref[...], preferred_element_type=jnp.float32)
    h1 = jnp.maximum(h1 + b1_ref[...], 0.0).astype(jnp.bfloat16)    # (4*hw, Cmid)
    par = [h1[p * hw:(p + 1) * hw] for p in range(4)]               # parity slices

    # Border-validity masks for the -1 spatial shifts (padding=1 zeros).
    row = lax.broadcasted_iota(jnp.int32, (hw, cmid_p), 0)
    top_ok = row >= wo                    # reading output-row i-1 is in bounds
    left_ok = lax.rem(row, wo) != 0       # reading output-col j-1 is in bounds

    # ---- 3x3 stride-2 conv (padding=1) as 9 accumulating MXU matmuls ------- #
    # kernel offset kh/kw in {0,1,2}  ->  (parity, shift) along that axis
    tap = ((1, -1), (0, 0), (1, 0))
    acc = jnp.zeros((hw, cmid_p), jnp.float32)
    for kh in range(3):
        ph, dh = tap[kh]
        for kw in range(3):
            pw, dw = tap[kw]
            prod = jnp.dot(par[2 * ph + pw], wc_ref[kh * 3 + kw],
                           preferred_element_type=jnp.float32)
            shift = (-dh) * wo + (-dw)
            if shift:
                # Shift the product instead of the LHS: row permutations
                # commute with right-multiplication.  XLU rotate + VPU select.
                prod = pltpu.roll(prod, shift=shift, axis=0)
                mask = top_ok if dh else None
                if dw:
                    mask = left_ok if mask is None else jnp.logical_and(mask, left_ok)
                prod = jnp.where(mask, prod, 0.0)
            acc += prod
    h2 = jnp.maximum(acc + bc_ref[...], 0.0).astype(jnp.bfloat16)

    # ---- out_bottleneck (1x1) + residual (stride-2 1x1) + final ReLU ------- #
    out3 = jnp.dot(h2, w3_ref[...], preferred_element_type=jnp.float32) + b3_ref[...]
    res = jnp.dot(par_x0 := x_all[:hw], wd_ref[...],
                  preferred_element_type=jnp.float32) + bd_ref[...]
    del par_x0

    added_ref[0] = res + out3                # X + out      (auxiliary output)
    final_ref[0] = jnp.maximum(res, 0.0)     # relu(X)      (module's return value)


# --------------------------------------------------------------------------- #
# Weight preparation: PyTorch OIHW -> (Cin_pad, Cout_pad) bf16, bias -> (1, Cout_pad)
# --------------------------------------------------------------------------- #
def _prep_1x1(w, b, cin_p, cout_p):
    o, i = w.shape[0], w.shape[1]
    wt = jnp.transpose(w[:, :, 0, 0])                                  # (I, O)
    wt = jnp.pad(wt, ((0, cin_p - i), (0, cout_p - o))).astype(jnp.bfloat16)
    bp = jnp.pad(b, (0, cout_p - o)).astype(jnp.float32)[None, :]
    return wt, bp


def _prep_3x3(w, b, cin_p, cout_p):
    o, i = w.shape[0], w.shape[1]
    wt = jnp.transpose(w, (2, 3, 1, 0)).reshape(9, i, o)               # (tap, I, O)
    wt = jnp.pad(wt, ((0, 0), (0, cin_p - i), (0, cout_p - o))).astype(jnp.bfloat16)
    bp = jnp.pad(b, (0, cout_p - o)).astype(jnp.float32)[None, :]
    return wt, bp


# --------------------------------------------------------------------------- #
# Forward
# --------------------------------------------------------------------------- #
def bottleneck_residual_block(params, x_nchw, *, downsample):
    if not downsample:
        # TODO(synk): downsample=False branch not implemented — the reference
        # module's configuration is internally inconsistent there (3x3 conv is
        # declared with in_channels inputs but applied to inter_channels
        # activations); only the validated downsample=True path is translated.
        raise NotImplementedError("only downsample=True is supported")

    n, cin, h, w = x_nchw.shape
    assert h % 2 == 0 and w % 2 == 0
    ho, wo = h // 2, w // 2
    hw = ho * wo

    cinter = params["in_bottleneck"]["w"].shape[0]
    cout = params["out_bottleneck"]["w"].shape[0]
    cin_p = _round_up(cin, LANE)
    cmid_p = _round_up(cinter, LANE)
    cout_p = _round_up(cout, LANE)

    # XLA glue (one fused transpose/pad of the small input):
    # NCHW -> NHWC, zero-pad channels to the lane width, parity rearrange, bf16.
    x_nhwc = jnp.transpose(x_nchw, (0, 2, 3, 1)).astype(jnp.float32)
    x_pad = jnp.pad(x_nhwc, ((0, 0), (0, 0), (0, 0), (0, cin_p - cin)))
    xp = x_pad.reshape(n, ho, 2, wo, 2, cin_p)
    xp = jnp.transpose(xp, (0, 2, 4, 1, 3, 5)).reshape(n, 4 * hw, cin_p)
    xp = xp.astype(jnp.bfloat16)

    w1, b1 = _prep_1x1(params["in_bottleneck"]["w"], params["in_bottleneck"]["b"],
                       cin_p, cmid_p)
    wc, bc = _prep_3x3(params["conv"]["w"], params["conv"]["b"], cmid_p, cmid_p)
    w3, b3 = _prep_1x1(params["out_bottleneck"]["w"], params["out_bottleneck"]["b"],
                       cmid_p, cout_p)
    wd, bd = _prep_1x1(params["downsample_conv"]["w"], params["downsample_conv"]["b"],
                       cin_p, cout_p)

    kernel = functools.partial(_fused_block_kernel, ho=ho, wo=wo)

    flops = 2 * n * hw * (4 * cin_p * cmid_p + 9 * cmid_p * cmid_p
                          + cmid_p * cout_p + cin_p * cout_p)
    bytes_accessed = (xp.size * 2
                      + (w1.size + wc.size + w3.size + wd.size) * 2
                      + (b1.size + bc.size + b3.size + bd.size) * 4
                      + 2 * n * hw * cout_p * 4)

    final_p, added_p = pl.pallas_call(
        kernel,
        out_shape=(jax.ShapeDtypeStruct((n, hw, cout_p), jnp.float32),
                   jax.ShapeDtypeStruct((n, hw, cout_p), jnp.float32)),
        grid=(n,),
        in_specs=[
            pl.BlockSpec((1, 4 * hw, cin_p), lambda i: (i, 0, 0)),
            pl.BlockSpec((cin_p, cmid_p), lambda i: (0, 0)),
            pl.BlockSpec((1, cmid_p), lambda i: (0, 0)),
            pl.BlockSpec((9, cmid_p, cmid_p), lambda i: (0, 0, 0)),
            pl.BlockSpec((1, cmid_p), lambda i: (0, 0)),
            pl.BlockSpec((cmid_p, cout_p), lambda i: (0, 0)),
            pl.BlockSpec((1, cout_p), lambda i: (0, 0)),
            pl.BlockSpec((cin_p, cout_p), lambda i: (0, 0)),
            pl.BlockSpec((1, cout_p), lambda i: (0, 0)),
        ],
        out_specs=(
            pl.BlockSpec((1, hw, cout_p), lambda i: (i, 0, 0)),
            pl.BlockSpec((1, hw, cout_p), lambda i: (i, 0, 0)),
        ),
        compiler_params=pltpu.CompilerParams(
            dimension_semantics=("parallel",),
            vmem_limit_bytes=32 * 1024 * 1024,
        ),
        cost_estimate=pl.CostEstimate(flops=flops, transcendentals=0,
                                      bytes_accessed=bytes_accessed),
    )(xp, w1, b1, wc, bc, w3, b3, wd, bd)

    final = jnp.transpose(final_p[:, :, :cout].reshape(n, ho, wo, cout), (0, 3, 1, 2))
    added = jnp.transpose(added_p[:, :, :cout].reshape(n, ho, wo, cout), (0, 3, 1, 2))
    return final, added


# --------------------------------------------------------------------------- #
# Parameters (deterministic init, PyTorch Conv2d weight layout OIHW)
# --------------------------------------------------------------------------- #
def _conv_params(key, out_c, in_c, kh, kw):
    kw_key, kb_key = jax.random.split(key)
    fan_in = in_c * kh * kw
    bound = float(1.0 / (fan_in ** 0.5))
    w = jax.random.uniform(kw_key, (out_c, in_c, kh, kw), jnp.float32, -bound, bound)
    b = jax.random.uniform(kb_key, (out_c,), jnp.float32, -bound, bound)
    return {"w": w, "b": b}


def init_params(key, in_c, inter_c, out_c, downsample):
    k0, k1, k2, k3 = jax.random.split(key, 4)
    params = {
        "in_bottleneck": _conv_params(k0, inter_c, in_c, 1, 1),
        "out_bottleneck": _conv_params(k2, out_c, inter_c, 1, 1),
    }
    if downsample:
        params["conv"] = _conv_params(k1, inter_c, inter_c, 3, 3)
        params["downsample_conv"] = _conv_params(k3, out_c, in_c, 1, 1)
    else:
        params["conv"] = _conv_params(k1, out_c, in_c, 3, 3)
    return params


# --------------------------------------------------------------------------- #
# Pure-JAX reference (for validation)
# --------------------------------------------------------------------------- #
def _reference(params, x_nchw, downsample):
    def conv(x, p, stride, pad):
        return lax.conv_general_dilated(
            x, p["w"], (stride, stride), pad,
            dimension_numbers=("NCHW", "OIHW", "NCHW"),
            precision=lax.Precision.HIGHEST,
        ) + p["b"][None, :, None, None]

    out = jax.nn.relu(conv(x_nchw, params["in_bottleneck"], 1, "VALID"))
    stride = 2 if downsample else 1
    out = jax.nn.relu(conv(out, params["conv"], stride, [(1, 1), (1, 1)]))
    out = conv(out, params["out_bottleneck"], 1, "VALID")
    res = conv(x_nchw, params["downsample_conv"], 2, "VALID") if downsample else x_nchw
    return jax.nn.relu(res), res + out


# --------------------------------------------------------------------------- #
if __name__ == "__main__":
    key = jax.random.PRNGKey(0)
    k_param, k_x = jax.random.split(key)

    in_c, inter_c, out_c = 4, 8, 16
    downsample = True
    x = jax.random.normal(k_x, (2, in_c, 16, 16), jnp.float32)     # NCHW like PyTorch

    params = init_params(k_param, in_c, inter_c, out_c, downsample)

    fwd = jax.jit(functools.partial(bottleneck_residual_block, downsample=downsample))
    final, added = fwd(params, x)
    jax.block_until_ready((final, added))

    # Reference in f32 on bf16-rounded inputs (the kernel feeds bf16 MXU operands
    # with f32 accumulation).
    rt = lambda a: a.astype(jnp.bfloat16).astype(jnp.float32)
    params_bf = jax.tree_util.tree_map(rt, params)
    ref_final, ref_added = _reference(params_bf, rt(x), downsample)

    assert final.shape == (2, out_c, 8, 8), final.shape
    assert jnp.allclose(final, ref_final, rtol=2e-2, atol=2e-2), \
        float(jnp.max(jnp.abs(final - ref_final)))
    assert jnp.allclose(added, ref_added, rtol=2e-2, atol=2e-2), \
        float(jnp.max(jnp.abs(added - ref_added)))

    print("KERNEL_OK")
</pallas_src>

<mosaic_0001>
module attributes {stable_mosaic.version = 11 : i64} {
  func.func @_fused_block_kernel(%arg0: i32, %arg1: memref<1x256x128xbf16, #tpu.memory_space<vmem>>, %arg2: memref<128x128xbf16, #tpu.memory_space<vmem>>, %arg3: memref<1x128xf32, #tpu.memory_space<vmem>>, %arg4: memref<9x128x128xbf16, #tpu.memory_space<vmem>>, %arg5: memref<1x128xf32, #tpu.memory_space<vmem>>, %arg6: memref<128x128xbf16, #tpu.memory_space<vmem>>, %arg7: memref<1x128xf32, #tpu.memory_space<vmem>>, %arg8: memref<128x128xbf16, #tpu.memory_space<vmem>>, %arg9: memref<1x128xf32, #tpu.memory_space<vmem>>, %arg10: memref<1x64x128xf32, #tpu.memory_space<vmem>>, %arg11: memref<1x64x128xf32, #tpu.memory_space<vmem>>) attributes {dimension_semantics = [#tpu.dimension_semantics<parallel>], iteration_bounds = array<i64: 2>, scalar_prefetch = 0 : i64, scratch_operands = 0 : i64, tpu.core_type = #tpu.core_type<tc>, window_params = [{transform_indices = @transform_0, window_bounds = array<i64: 1, 256, 128>}, {pipeline_mode = #tpu.pipeline_mode<synchronous>, transform_indices = @transform_1, window_bounds = array<i64: 128, 128>}, {pipeline_mode = #tpu.pipeline_mode<synchronous>, transform_indices = @transform_2, window_bounds = array<i64: 1, 128>}, {pipeline_mode = #tpu.pipeline_mode<synchronous>, transform_indices = @transform_3, window_bounds = array<i64: 9, 128, 128>}, {pipeline_mode = #tpu.pipeline_mode<synchronous>, transform_indices = @transform_4, window_bounds = array<i64: 1, 128>}, {pipeline_mode = #tpu.pipeline_mode<synchronous>, transform_indices = @transform_5, window_bounds = array<i64: 128, 128>}, {pipeline_mode = #tpu.pipeline_mode<synchronous>, transform_indices = @transform_6, window_bounds = array<i64: 1, 128>}, {pipeline_mode = #tpu.pipeline_mode<synchronous>, transform_indices = @transform_7, window_bounds = array<i64: 128, 128>}, {pipeline_mode = #tpu.pipeline_mode<synchronous>, transform_indices = @transform_8, window_bounds = array<i64: 1, 128>}, {transform_indices = @transform_9, window_bounds = array<i64: 1, 64, 128>}, {transform_indices = @transform_10, window_bounds = array<i64: 1, 64, 128>}]} {
    %c0 = arith.constant 0 : index
    %c0_0 = arith.constant 0 : index
    %c0_1 = arith.constant 0 : index
    %0 = vector.load %arg1[%c0, %c0_0, %c0_1] : memref<1x256x128xbf16, #tpu.memory_space<vmem>>, vector<1x256x128xbf16>
    %1 = vector.shape_cast %0 : vector<1x256x128xbf16> to vector<256x128xbf16>
    %c0_2 = arith.constant 0 : index
    %c0_3 = arith.constant 0 : index
    %2 = vector.load %arg2[%c0_2, %c0_3] : memref<128x128xbf16, #tpu.memory_space<vmem>>, vector<128x128xbf16>
    %cst = arith.constant dense<0.000000e+00> : vector<256x128xf32>
    %3 = tpu.matmul %1, %2, %cst {dimension_numbers = #tpu.dot_dimension_numbers<[1], [0], [0], [1], [0, 0, 1, 1], [], []>} : vector<256x128xbf16>, vector<128x128xbf16>, vector<256x128xf32> -> vector<256x128xf32>
    %c0_4 = arith.constant 0 : index
    %c0_5 = arith.constant 0 : index
    %4 = vector.load %arg3[%c0_4, %c0_5] : memref<1x128xf32, #tpu.memory_space<vmem>>, vector<1x128xf32>
    %5 = vector.broadcast %4 : vector<1x128xf32> to vector<256x128xf32>
    %6 = arith.addf %3, %5 : vector<256x128xf32>
    %cst_6 = arith.constant 0.000000e+00 : f32
    %7 = vector.broadcast %cst_6 : f32 to vector<256x128xf32>
    %8 = arith.maximumf %6, %7 : vector<256x128xf32>
    %9 = arith.truncf %8 : vector<256x128xf32> to vector<256x128xbf16>
    %10 = vector.extract_strided_slice %9 {offsets = [0, 0], sizes = [64, 128], strides = [1, 1]} : vector<256x128xbf16> to vector<64x128xbf16>
    %11 = vector.extract_strided_slice %9 {offsets = [64, 0], sizes = [64, 128], strides = [1, 1]} : vector<256x128xbf16> to vector<64x128xbf16>
    %12 = vector.extract_strided_slice %9 {offsets = [128, 0], sizes = [64, 128], strides = [1, 1]} : vector<256x128xbf16> to vector<64x128xbf16>
    %13 = vector.extract_strided_slice %9 {offsets = [192, 0], sizes = [64, 128], strides = [1, 1]} : vector<256x128xbf16> to vector<64x128xbf16>
    %14 = tpu.iota {dimensions = array<i32: 0>} : vector<64x128xi32>
    %c8_i32 = arith.constant 8 : i32
    %15 = vector.broadcast %c8_i32 : i32 to vector<64x128xi32>
    %16 = arith.cmpi sge, %14, %15 : vector<64x128xi32>
    %c8_i32_7 = arith.constant 8 : i32
    %17 = vector.broadcast %c8_i32_7 : i32 to vector<64x128xi32>
    %18 = arith.remsi %14, %17 : vector<64x128xi32>
    %c0_i32 = arith.constant 0 : i32
    %19 = vector.broadcast %c0_i32 : i32 to vector<64x128xi32>
    %20 = arith.cmpi ne, %18, %19 : vector<64x128xi32>
    %cst_8 = arith.constant 0.000000e+00 : f32
    %21 = vector.broadcast %cst_8 : f32 to vector<64x128xf32>
    %c0_9 = arith.constant 0 : index
    %c0_10 = arith.constant 0 : index
    %c0_11 = arith.constant 0 : index
    %22 = vector.load %arg4[%c0_9, %c0_10, %c0_11] : memref<9x128x128xbf16, #tpu.memory_space<vmem>>, vector<1x128x128xbf16>
    %23 = vector.shape_cast %22 : vector<1x128x128xbf16> to vector<128x128xbf16>
    %cst_12 = arith.constant dense<0.000000e+00> : vector<64x128xf32>
    %24 = tpu.matmul %13, %23, %cst_12 {dimension_numbers = #tpu.dot_dimension_numbers<[1], [0], [0], [1], [0, 0, 1, 1], [], []>} : vector<64x128xbf16>, vector<128x128xbf16>, vector<64x128xf32> -> vector<64x128xf32>
    %c9_i32 = arith.constant 9 : i32
    %25 = tpu.dynamic_rotate %24 by %c9_i32 dim 0 : vector<64x128xf32>, i32 -> vector<64x128xf32>
    %26 = arith.andi %16, %20 : vector<64x128xi1>
    %cst_13 = arith.constant 0.000000e+00 : f32
    %27 = vector.broadcast %cst_13 : f32 to vector<64x128xf32>
    %28 = arith.select %26, %25, %27 : vector<64x128xi1>, vector<64x128xf32>
    %29 = arith.addf %21, %28 : vector<64x128xf32>
    %c1 = arith.constant 1 : index
    %c0_14 = arith.constant 0 : index
    %c0_15 = arith.constant 0 : index
    %30 = vector.load %arg4[%c1, %c0_14, %c0_15] : memref<9x128x128xbf16, #tpu.memory_space<vmem>>, vector<1x128x128xbf16>
    %31 = vector.shape_cast %30 : vector<1x128x128xbf16> to vector<128x128xbf16>
    %cst_16 = arith.constant dense<0.000000e+00> : vector<64x128xf32>
    %32 = tpu.matmul %12, %31, %cst_16 {dimension_numbers = #tpu.dot_dimension_numbers<[1], [0], [0], [1], [0, 0, 1, 1], [], []>} : vector<64x128xbf16>, vector<128x128xbf16>, vector<64x128xf32> -> vector<64x128xf32>
    %c8_i32_17 = arith.constant 8 : i32
    %33 = tpu.dynamic_rotate %32 by %c8_i32_17 dim 0 : vector<64x128xf32>, i32 -> vector<64x128xf32>
    %cst_18 = arith.constant 0.000000e+00 : f32
    %34 = vector.broadcast %cst_18 : f32 to vector<64x128xf32>
    %35 = arith.select %16, %33, %34 : vector<64x128xi1>, vector<64x128xf32>
    %36 = arith.addf %29, %35 : vector<64x128xf32>
    %c2 = arith.constant 2 : index
    %c0_19 = arith.constant 0 : index
    %c0_20 = arith.constant 0 : index
    %37 = vector.load %arg4[%c2, %c0_19, %c0_20] : memref<9x128x128xbf16, #tpu.memory_space<vmem>>, vector<1x128x128xbf16>
    %38 = vector.shape_cast %37 : vector<1x128x128xbf16> to vector<128x128xbf16>
    %cst_21 = arith.constant dense<0.000000e+00> : vector<64x128xf32>
    %39 = tpu.matmul %13, %38, %cst_21 {dimension_numbers = #tpu.dot_dimension_numbers<[1], [0], [0], [1], [0, 0, 1, 1], [], []>} : vector<64x128xbf16>, vector<128x128xbf16>, vector<64x128xf32> -> vector<64x128xf32>
    %c8_i32_22 = arith.constant 8 : i32
    %40 = tpu.dynamic_rotate %39 by %c8_i32_22 dim 0 : vector<64x128xf32>, i32 -> vector<64x128xf32>
    %cst_23 = arith.constant 0.000000e+00 : f32
    %41 = vector.broadcast %cst_23 : f32 to vector<64x128xf32>
    %42 = arith.select %16, %40, %41 : vector<64x128xi1>, vector<64x128xf32>
    %43 = arith.addf %36, %42 : vector<64x128xf32>
    %c3 = arith.constant 3 : index
    %c0_24 = arith.constant 0 : index
    %c0_25 = arith.constant 0 : index
    %44 = vector.load %arg4[%c3, %c0_24, %c0_25] : memref<9x128x128xbf16, #tpu.memory_space<vmem>>, vector<1x128x128xbf16>
    %45 = vector.shape_cast %44 : vector<1x128x128xbf16> to vector<128x128xbf16>
    %cst_26 = arith.constant dense<0.000000e+00> : vector<64x128xf32>
    %46 = tpu.matmul %11, %45, %cst_26 {dimension_numbers = #tpu.dot_dimension_numbers<[1], [0], [0], [1], [0, 0, 1, 1], [], []>} : vector<64x128xbf16>, vector<128x128xbf16>, vector<64x128xf32> -> vector<64x128xf32>
    %c1_i32 = arith.constant 1 : i32
    %47 = tpu.dynamic_rotate %46 by %c1_i32 dim 0 : vector<64x128xf32>, i32 -> vector<64x128xf32>
    %cst_27 = arith.constant 0.000000e+00 : f32
    %48 = vector.broadcast %cst_27 : f32 to vector<64x128xf32>
    %49 = arith.select %20, %47, %48 : vector<64x128xi1>, vector<64x128xf32>
    %50 = arith.addf %43, %49 : vector<64x128xf32>
    %c4 = arith.constant 4 : index
    %c0_28 = arith.constant 0 : index
    %c0_29 = arith.constant 0 : index
    %51 = vector.load %arg4[%c4, %c0_28, %c0_29] : memref<9x128x128xbf16, #tpu.memory_space<vmem>>, vector<1x128x128xbf16>
    %52 = vector.shape_cast %51 : vector<1x128x128xbf16> to vector<128x128xbf16>
    %cst_30 = arith.constant dense<0.000000e+00> : vector<64x128xf32>
    %53 = tpu.matmul %10, %52, %cst_30 {dimension_numbers = #tpu.dot_dimension_numbers<[1], [0], [0], [1], [0, 0, 1, 1], [], []>} : vector<64x128xbf16>, vector<128x128xbf16>, vector<64x128xf32> -> vector<64x128xf32>
    %54 = arith.addf %50, %53 : vector<64x128xf32>
    %c5 = arith.constant 5 : index
    %c0_31 = arith.constant 0 : index
    %c0_32 = arith.constant 0 : index
    %55 = vector.load %arg4[%c5, %c0_31, %c0_32] : memref<9x128x128xbf16, #tpu.memory_space<vmem>>, vector<1x128x128xbf16>
    %56 = vector.shape_cast %55 : vector<1x128x128xbf16> to vector<128x128xbf16>
    %cst_33 = arith.constant dense<0.000000e+00> : vector<64x128xf32>
    %57 = tpu.matmul %11, %56, %cst_33 {dimension_numbers = #tpu.dot_dimension_numbers<[1], [0], [0], [1], [0, 0, 1, 1], [], []>} : vector<64x128xbf16>, vector<128x128xbf16>, vector<64x128xf32> -> vector<64x128xf32>
    %58 = arith.addf %54, %57 : vector<64x128xf32>
    %c6 = arith.constant 6 : index
    %c0_34 = arith.constant 0 : index
    %c0_35 = arith.constant 0 : index
    %59 = vector.load %arg4[%c6, %c0_34, %c0_35] : memref<9x128x128xbf16, #tpu.memory_space<vmem>>, vector<1x128x128xbf16>
    %60 = vector.shape_cast %59 : vector<1x128x128xbf16> to vector<128x128xbf16>
    %cst_36 = arith.constant dense<0.000000e+00> : vector<64x128xf32>
    %61 = tpu.matmul %13, %60, %cst_36 {dimension_numbers = #tpu.dot_dimension_numbers<[1], [0], [0], [1], [0, 0, 1, 1], [], []>} : vector<64x128xbf16>, vector<128x128xbf16>, vector<64x128xf32> -> vector<64x128xf32>
    %c1_i32_37 = arith.constant 1 : i32
    %62 = tpu.dynamic_rotate %61 by %c1_i32_37 dim 0 : vector<64x128xf32>, i32 -> vector<64x128xf32>
    %cst_38 = arith.constant 0.000000e+00 : f32
    %63 = vector.broadcast %cst_38 : f32 to vector<64x128xf32>
    %64 = arith.select %20, %62, %63 : vector<64x128xi1>, vector<64x128xf32>
    %65 = arith.addf %58, %64 : vector<64x128xf32>
    %c7 = arith.constant 7 : index
    %c0_39 = arith.constant 0 : index
    %c0_40 = arith.constant 0 : index
    %66 = vector.load %arg4[%c7, %c0_39, %c0_40] : memref<9x128x128xbf16, #tpu.memory_space<vmem>>, vector<1x128x128xbf16>
    %67 = vector.shape_cast %66 : vector<1x128x128xbf16> to vector<128x128xbf16>
    %cst_41 = arith.constant dense<0.000000e+00> : vector<64x128xf32>
    %68 = tpu.matmul %12, %67, %cst_41 {dimension_numbers = #tpu.dot_dimension_numbers<[1], [0], [0], [1], [0, 0, 1, 1], [], []>} : vector<64x128xbf16>, vector<128x128xbf16>, vector<64x128xf32> -> vector<64x128xf32>
    %69 = arith.addf %65, %68 : vector<64x128xf32>
    %c8 = arith.constant 8 : index
    %c0_42 = arith.constant 0 : index
    %c0_43 = arith.constant 0 : index
    %70 = vector.load %arg4[%c8, %c0_42, %c0_43] : memref<9x128x128xbf16, #tpu.memory_space<vmem>>, vector<1x128x128xbf16>
    %71 = vector.shape_cast %70 : vector<1x128x128xbf16> to vector<128x128xbf16>
    %cst_44 = arith.constant dense<0.000000e+00> : vector<64x128xf32>
    %72 = tpu.matmul %13, %71, %cst_44 {dimension_numbers = #tpu.dot_dimension_numbers<[1], [0], [0], [1], [0, 0, 1, 1], [], []>} : vector<64x128xbf16>, vector<128x128xbf16>, vector<64x128xf32> -> vector<64x128xf32>
    %73 = arith.addf %69, %72 : vector<64x128xf32>
    %c0_45 = arith.constant 0 : index
    %c0_46 = arith.constant 0 : index
    %74 = vector.load %arg5[%c0_45, %c0_46] : memref<1x128xf32, #tpu.memory_space<vmem>>, vector<1x128xf32>
    %75 = vector.broadcast %74 : vector<1x128xf32> to vector<64x128xf32>
    %76 = arith.addf %73, %75 : vector<64x128xf32>
    %cst_47 = arith.constant 0.000000e+00 : f32
    %77 = vector.broadcast %cst_47 : f32 to vector<64x128xf32>
    %78 = arith.maximumf %76, %77 : vector<64x128xf32>
    %79 = arith.truncf %78 : vector<64x128xf32> to vector<64x128xbf16>
    %c0_48 = arith.constant 0 : index
    %c0_49 = arith.constant 0 : index
    %80 = vector.load %arg6[%c0_48, %c0_49] : memref<128x128xbf16, #tpu.memory_space<vmem>>, vector<128x128xbf16>
    %cst_50 = arith.constant dense<0.000000e+00> : vector<64x128xf32>
    %81 = tpu.matmul %79, %80, %cst_50 {dimension_numbers = #tpu.dot_dimension_numbers<[1], [0], [0], [1], [0, 0, 1, 1], [], []>} : vector<64x128xbf16>, vector<128x128xbf16>, vector<64x128xf32> -> vector<64x128xf32>
    %c0_51 = arith.constant 0 : index
    %c0_52 = arith.constant 0 : index
    %82 = vector.load %arg7[%c0_51, %c0_52] : memref<1x128xf32, #tpu.memory_space<vmem>>, vector<1x128xf32>
    %83 = vector.broadcast %82 : vector<1x128xf32> to vector<64x128xf32>
    %84 = arith.addf %81, %83 : vector<64x128xf32>
    %85 = vector.extract_strided_slice %1 {offsets = [0, 0], sizes = [64, 128], strides = [1, 1]} : vector<256x128xbf16> to vector<64x128xbf16>
    %c0_53 = arith.constant 0 : index
    %c0_54 = arith.constant 0 : index
    %86 = vector.load %arg8[%c0_53, %c0_54] : memref<128x128xbf16, #tpu.memory_space<vmem>>, vector<128x128xbf16>
    %cst_55 = arith.constant dense<0.000000e+00> : vector<64x128xf32>
    %87 = tpu.matmul %85, %86, %cst_55 {dimension_numbers = #tpu.dot_dimension_numbers<[1], [0], [0], [1], [0, 0, 1, 1], [], []>} : vector<64x128xbf16>, vector<128x128xbf16>, vector<64x128xf32> -> vector<64x128xf32>
    %c0_56 = arith.constant 0 : index
    %c0_57 = arith.constant 0 : index
    %88 = vector.load %arg9[%c0_56, %c0_57] : memref<1x128xf32, #tpu.memory_space<vmem>>, vector<1x128xf32>
    %89 = vector.broadcast %88 : vector<1x128xf32> to vector<64x128xf32>
    %90 = arith.addf %87, %89 : vector<64x128xf32>
    %91 = arith.addf %90, %84 : vector<64x128xf32>
    %c0_58 = arith.constant 0 : index
    %c0_59 = arith.constant 0 : index
    %c0_60 = arith.constant 0 : index
    %92 = vector.load %arg11[%c0_58, %c0_59, %c0_60] : memref<1x64x128xf32, #tpu.memory_space<vmem>>, vector<1x64x128xf32>
    %93 = vector.shape_cast %92 : vector<1x64x128xf32> to vector<64x128xf32>
    %94 = vector.shape_cast %91 : vector<64x128xf32> to vector<1x64x128xf32>
    tpu.vector_store %arg11[%c0_58, %c0_59, %c0_60], %94 {strides = array<i32>} : memref<1x64x128xf32, #tpu.memory_space<vmem>>, vector<1x64x128xf32>,
    %cst_61 = arith.constant 0.000000e+00 : f32
    %95 = vector.broadcast %cst_61 : f32 to vector<64x128xf32>
    %96 = arith.maximumf %90, %95 : vector<64x128xf32>
    %c0_62 = arith.constant 0 : index
    %c0_63 = arith.constant 0 : index
    %c0_64 = arith.constant 0 : index
    %97 = vector.load %arg10[%c0_62, %c0_63, %c0_64] : memref<1x64x128xf32, #tpu.memory_space<vmem>>, vector<1x64x128xf32>
    %98 = vector.shape_cast %97 : vector<1x64x128xf32> to vector<64x128xf32>
    %99 = vector.shape_cast %96 : vector<64x128xf32> to vector<1x64x128xf32>
    tpu.vector_store %arg10[%c0_62, %c0_63, %c0_64], %99 {strides = array<i32>} : memref<1x64x128xf32, #tpu.memory_space<vmem>>, vector<1x64x128xf32>,
    return
  }
  func.func @transform_0(%arg0: i32) -> (i32, i32, i32) {
    %c0_i32 = arith.constant 0 : i32
    %c0_i32_0 = arith.constant 0 : i32
    %c0_i32_1 = arith.constant 0 : i32
    return %arg0, %c0_i32, %c0_i32_0 : i32, i32, i32
  }
  func.func @transform_1(%arg0: i32) -> (i32, i32) {
    %c0_i32 = arith.constant 0 : i32
    %c0_i32_0 = arith.constant 0 : i32
    %c0_i32_1 = arith.constant 0 : i32
    return %c0_i32, %c0_i32_0 : i32, i32
  }
  func.func @transform_2(%arg0: i32) -> (i32, i32) {
    %c0_i32 = arith.constant 0 : i32
    %c0_i32_0 = arith.constant 0 : i32
    %c0_i32_1 = arith.constant 0 : i32
    return %c0_i32, %c0_i32_0 : i32, i32
  }
  func.func @transform_3(%arg0: i32) -> (i32, i32, i32) {
    %c0_i32 = arith.constant 0 : i32
    %c0_i32_0 = arith.constant 0 : i32
    %c0_i32_1 = arith.constant 0 : i32
    %c0_i32_2 = arith.constant 0 : i32
    return %c0_i32, %c0_i32_0, %c0_i32_1 : i32, i32, i32
  }
  func.func @transform_4(%arg0: i32) -> (i32, i32) {
    %c0_i32 = arith.constant 0 : i32
    %c0_i32_0 = arith.constant 0 : i32
    %c0_i32_1 = arith.constant 0 : i32
    return %c0_i32, %c0_i32_0 : i32, i32
  }
  func.func @transform_5(%arg0: i32) -> (i32, i32) {
    %c0_i32 = arith.constant 0 : i32
    %c0_i32_0 = arith.constant 0 : i32
    %c0_i32_1 = arith.constant 0 : i32
    return %c0_i32, %c0_i32_0 : i32, i32
  }
  func.func @transform_6(%arg0: i32) -> (i32, i32) {
    %c0_i32 = arith.constant 0 : i32
    %c0_i32_0 = arith.constant 0 : i32
    %c0_i32_1 = arith.constant 0 : i32
    return %c0_i32, %c0_i32_0 : i32, i32
  }
  func.func @transform_7(%arg0: i32) -> (i32, i32) {
    %c0_i32 = arith.constant 0 : i32
    %c0_i32_0 = arith.constant 0 : i32
    %c0_i32_1 = arith.constant 0 : i32
    return %c0_i32, %c0_i32_0 : i32, i32
  }
  func.func @transform_8(%arg0: i32) -> (i32, i32) {
    %c0_i32 = arith.constant 0 : i32
    %c0_i32_0 = arith.constant 0 : i32
    %c0_i32_1 = arith.constant 0 : i32
    return %c0_i32, %c0_i32_0 : i32, i32
  }
  func.func @transform_9(%arg0: i32) -> (i32, i32, i32) {
    %c0_i32 = arith.constant 0 : i32
    %c0_i32_0 = arith.constant 0 : i32
    %c0_i32_1 = arith.constant 0 : i32
    return %arg0, %c0_i32, %c0_i32_0 : i32, i32, i32
  }
  func.func @transform_10(%arg0: i32) -> (i32, i32, i32) {
    %c0_i32 = arith.constant 0 : i32
    %c0_i32_0 = arith.constant 0 : i32
    %c0_i32_1 = arith.constant 0 : i32
    return %arg0, %c0_i32, %c0_i32_0 : i32, i32, i32
  }
}

</mosaic_0001>

<llo_original>
// kernel: bottleneck_residual_block.1
$region0: #{bottleneck_residual_block.1}
  #allocation0 [shape = 'u32[]', space=smem, size = 0x4, offset = 0x4, fixed_abs, tag = 'smem constant byte address 0x4 - core index']
  #allocation1 [shape = 'u32[72,128]{1,0:T(1,128)}', space=vmem, size = 0x9000, scoped, tag = 'internal scratch']
  %s0 = inlined_call_operand.vmem [shape: bf16[2,256,128], index: 0, kind: input, shape index: {}]
  %s1 = inlined_call_operand.vmem [shape: bf16[128,128], index: 1, kind: input, shape index: {}]
  %s2 = inlined_call_operand.vmem [shape: f32[1,128], index: 2, kind: input, shape index: {}]
  %s3 = inlined_call_operand.vmem [shape: bf16[9,128,128], index: 3, kind: input, shape index: {}]
  %s4 = inlined_call_operand.vmem [shape: f32[1,128], index: 4, kind: input, shape index: {}]
  %s5 = inlined_call_operand.vmem [shape: bf16[128,128], index: 5, kind: input, shape index: {}]
  %s6 = inlined_call_operand.vmem [shape: f32[1,128], index: 6, kind: input, shape index: {}]
  %s7 = inlined_call_operand.vmem [shape: bf16[128,128], index: 7, kind: input, shape index: {}]
  %s8 = inlined_call_operand.vmem [shape: f32[1,128], index: 8, kind: input, shape index: {}]
  %s9 = inlined_call_operand.vmem [shape: f32[2,64,128], index: 9, kind: output, shape index: {0}]
  %s10 = inlined_call_operand.vmem [shape: f32[2,64,128], index: 10, kind: output, shape index: {1}]
  %11 = xla_tuple %s9, %s10
  %s12 = sld [smem:[#allocation0]]
  $region77: #{bottleneck_residual_block.1} parent=0
    _
  %s14 = ssub.s32 1, %s12
  %s15 = scalar_select 0, %s14, %s12
  loop: start=0, step=1, limit=4
  $region2: #{bottleneck_residual_block.1} parent=0 // loop_pre_header
    _
  $region3: #{bottleneck_residual_block.1} parent=0 // loop_header
    %s17 = sphi 0, %s21
    %p18 = scmp.ge.s32.totalorder %s17, 4
    %s27 = sphi 0, %s29
    %s30 = sphi 0, %s27
    %s31 = sphi 0, %s30
    %s47 = sphi 0, %s31
    %s51 = sphi 0, %s51
    %s53 = sphi 0, %s51
    %s54 = sphi 0, %s53
    %s68 = sphi 0, %s54
    %s72 = sphi 0, %s72
    %s74 = sphi 0, %s72
    %s75 = sphi 0, %s74
    %s89 = sphi 0, %s75
    %s93 = sphi 0, %s93
    %s95 = sphi 0, %s93
    %s96 = sphi 0, %s95
    %s110 = sphi 0, %s96
    %s114 = sphi 0, %s114
    %s116 = sphi 0, %s114
    %s117 = sphi 0, %s116
    %s131 = sphi 0, %s117
    %s135 = sphi 0, %s135
    %s137 = sphi 0, %s135
    %s138 = sphi 0, %s137
    %s152 = sphi 0, %s138
    %s156 = sphi 0, %s156
    %s158 = sphi 0, %s156
    %s159 = sphi 0, %s158
    %s173 = sphi 0, %s159
    %s177 = sphi 0, %s177
    %s179 = sphi 0, %s177
    %s180 = sphi 0, %s179
    %s194 = sphi 0, %s180
    %s198 = sphi 0, %s198
    %s200 = sphi 0, %s198
    %s201 = sphi 0, %s200
    %s215 = sphi 0, %s201
    %s221 = sphi 0, %s223
    %s224 = sphi 0, %s221
    %s225 = sphi 0, %s224
    %s241 = sphi 0, %s225
    %s247 = sphi 0, %s249
    %s250 = sphi 0, %s247
    %s251 = sphi 0, %s250
    %s267 = sphi 0, %s251
  $region4: #{bottleneck_residual_block.1} parent=0 // loop_header_branch
    %20 = sbr.rel (%p18) target = $region8
  $region5: #{bottleneck_residual_block.1} parent=0 // loop_body
    %s22 = ssub.s32 %s17, 1
    %s23 = ssub.s32 %s17, 2
    %s24 = sadd.s32 %s17, 1
    %s25 = ssub.s32 %s17, %s24
    %p26 = scmp.eq.s32.totalorder %s25, 0
    %s28 = sadd.s32 %s27, 1
    %s29 = scalar_select %p26, %s27, %s28
    %p32 = pneg %p26
    %p33 = scmp.eq.s32.totalorder %s17, 1
    %p34 = por %p32, %p33
    %p35 = scmp.ne.s32.totalorder %s27, %s30
    %p36 = scmp.eq.s32.totalorder %s17, 0
    %p37 = por %p35, %p36
    %p38 = scmp.ne.s32.totalorder %s27, %s30
    %p39 = scmp.eq.s32.totalorder %s22, 1
    %p40 = por %p38, %p39
    %p41 = scmp.ne.s32.totalorder %s30, %s31
    %p42 = scmp.eq.s32.totalorder %s22, 0
    %p43 = por %p41, %p42
    %p44 = scmp.ne.s32.totalorder %s30, %s31
    %p45 = scmp.eq.s32.totalorder %s23, 1
    %p46 = por %p44, %p45
    %p48 = scmp.ne.s32.totalorder %s31, %s47
    %p49 = scmp.eq.s32.totalorder %s23, 0
    %p50 = por %p48, %p49
    %s52 = sadd.s32 %s51, 1
    %p55 = scmp.eq.s32.totalorder %s17, 1
    %p56 = scmp.ne.s32.totalorder %s51, %s53
    %p57 = scmp.eq.s32.totalorder %s17, 0
    %p58 = por %p56, %p57
    %p59 = scmp.ne.s32.totalorder %s51, %s53
    %p60 = scmp.eq.s32.totalorder %s22, 1
    %p61 = por %p59, %p60
    %p62 = scmp.ne.s32.totalorder %s53, %s54
    %p63 = scmp.eq.s32.totalorder %s22, 0
    %p64 = por %p62, %p63
    %p65 = scmp.ne.s32.totalorder %s53, %s54
    %p66 = scmp.eq.s32.totalorder %s23, 1
    %p67 = por %p65, %p66
    %p69 = scmp.ne.s32.totalorder %s54, %s68
    %p70 = scmp.eq.s32.totalorder %s23, 0
    %p71 = por %p69, %p70
    %s73 = sadd.s32 %s72, 1
    %p76 = scmp.eq.s32.totalorder %s17, 1
    %p77 = scmp.ne.s32.totalorder %s72, %s74
    %p78 = scmp.eq.s32.totalorder %s17, 0
    %p79 = por %p77, %p78
    %p80 = scmp.ne.s32.totalorder %s72, %s74
    %p81 = scmp.eq.s32.totalorder %s22, 1
    %p82 = por %p80, %p81
    %p83 = scmp.ne.s32.totalorder %s74, %s75
    %p84 = scmp.eq.s32.totalorder %s22, 0
    %p85 = por %p83, %p84
    %p86 = scmp.ne.s32.totalorder %s74, %s75
    %p87 = scmp.eq.s32.totalorder %s23, 1
    %p88 = por %p86, %p87
    %p90 = scmp.ne.s32.totalorder %s75, %s89
    %p91 = scmp.eq.s32.totalorder %s23, 0
    %p92 = por %p90, %p91
    %s94 = sadd.s32 %s93, 1
    %p97 = scmp.eq.s32.totalorder %s17, 1
    %p98 = scmp.ne.s32.totalorder %s93, %s95
    %p99 = scmp.eq.s32.totalorder %s17, 0
    %p100 = por %p98, %p99
    %p101 = scmp.ne.s32.totalorder %s93, %s95
    %p102 = scmp.eq.s32.totalorder %s22, 1
    %p103 = por %p101, %p102
    %p104 = scmp.ne.s32.totalorder %s95, %s96
    %p105 = scmp.eq.s32.totalorder %s22, 0
    %p106 = por %p104, %p105
    %p107 = scmp.ne.s32.totalorder %s95, %s96
    %p108 = scmp.eq.s32.totalorder %s23, 1
    %p109 = por %p107, %p108
    %p111 = scmp.ne.s32.totalorder %s96, %s110
    %p112 = scmp.eq.s32.totalorder %s23, 0
    %p113 = por %p111, %p112
    %s115 = sadd.s32 %s114, 1
    %p118 = scmp.eq.s32.totalorder %s17, 1
    %p119 = scmp.ne.s32.totalorder %s114, %s116
    %p120 = scmp.eq.s32.totalorder %s17, 0
    %p121 = por %p119, %p120
    %p122 = scmp.ne.s32.totalorder %s114, %s116
    %p123 = scmp.eq.s32.totalorder %s22, 1
    %p124 = por %p122, %p123
    %p125 = scmp.ne.s32.totalorder %s116, %s117
    %p126 = scmp.eq.s32.totalorder %s22, 0
    %p127 = por %p125, %p126
    %p128 = scmp.ne.s32.totalorder %s116, %s117
    %p129 = scmp.eq.s32.totalorder %s23, 1
    %p130 = por %p128, %p129
    %p132 = scmp.ne.s32.totalorder %s117, %s131
    %p133 = scmp.eq.s32.totalorder %s23, 0
    %p134 = por %p132, %p133
    %s136 = sadd.s32 %s135, 1
    %p139 = scmp.eq.s32.totalorder %s17, 1
    %p140 = scmp.ne.s32.totalorder %s135, %s137
    %p141 = scmp.eq.s32.totalorder %s17, 0
    %p142 = por %p140, %p141
    %p143 = scmp.ne.s32.totalorder %s135, %s137
    %p144 = scmp.eq.s32.totalorder %s22, 1
    %p145 = por %p143, %p144
    %p146 = scmp.ne.s32.totalorder %s137, %s138
    %p147 = scmp.eq.s32.totalorder %s22, 0
    %p148 = por %p146, %p147
    %p149 = scmp.ne.s32.totalorder %s137, %s138
    %p150 = scmp.eq.s32.totalorder %s23, 1
    %p151 = por %p149, %p150
    %p153 = scmp.ne.s32.totalorder %s138, %s152
    %p154 = scmp.eq.s32.totalorder %s23, 0
    %p155 = por %p153, %p154
    %s157 = sadd.s32 %s156, 1
    %p160 = scmp.eq.s32.totalorder %s17, 1
    %p161 = scmp.ne.s32.totalorder %s156, %s158
    %p162 = scmp.eq.s32.totalorder %s17, 0
    %p163 = por %p161, %p162
    %p164 = scmp.ne.s32.totalorder %s156, %s158
    %p165 = scmp.eq.s32.totalorder %s22, 1
    %p166 = por %p164, %p165
    %p167 = scmp.ne.s32.totalorder %s158, %s159
    %p168 = scmp.eq.s32.totalorder %s22, 0
    %p169 = por %p167, %p168
    %p170 = scmp.ne.s32.totalorder %s158, %s159
    %p171 = scmp.eq.s32.totalorder %s23, 1
    %p172 = por %p170, %p171
    %p174 = scmp.ne.s32.totalorder %s159, %s173
    %p175 = scmp.eq.s32.totalorder %s23, 0
    %p176 = por %p174, %p175
    %s178 = sadd.s32 %s177, 1
    %p181 = scmp.eq.s32.totalorder %s17, 1
    %p182 = scmp.ne.s32.totalorder %s177, %s179
    %p183 = scmp.eq.s32.totalorder %s17, 0
    %p184 = por %p182, %p183
    %p185 = scmp.ne.s32.totalorder %s177, %s179
    %p186 = scmp.eq.s32.totalorder %s22, 1
    %p187 = por %p185, %p186
    %p188 = scmp.ne.s32.totalorder %s179, %s180
    %p189 = scmp.eq.s32.totalorder %s22, 0
    %p190 = por %p188, %p189
    %p191 = scmp.ne.s32.totalorder %s179, %s180
    %p192 = scmp.eq.s32.totalorder %s23, 1
    %p193 = por %p191, %p192
    %p195 = scmp.ne.s32.totalorder %s180, %s194
    %p196 = scmp.eq.s32.totalorder %s23, 0
    %p197 = por %p195, %p196
    %s199 = sadd.s32 %s198, 1
    %p202 = scmp.eq.s32.totalorder %s17, 1
    %p203 = scmp.ne.s32.totalorder %s198, %s200
    %p204 = scmp.eq.s32.totalorder %s17, 0
    %p205 = por %p203, %p204
    %p206 = scmp.ne.s32.totalorder %s198, %s200
    %p207 = scmp.eq.s32.totalorder %s22, 1
    %p208 = por %p206, %p207
    %p209 = scmp.ne.s32.totalorder %s200, %s201
    %p210 = scmp.eq.s32.totalorder %s22, 0
    %p211 = por %p209, %p210
    %p212 = scmp.ne.s32.totalorder %s200, %s201
    %p213 = scmp.eq.s32.totalorder %s23, 1
    %p214 = por %p212, %p213
    %p216 = scmp.ne.s32.totalorder %s201, %s215
    %p217 = scmp.eq.s32.totalorder %s23, 0
    %p218 = por %p216, %p217
    %s219 = ssub.s32 %s17, %s24
    %p220 = scmp.eq.s32.totalorder %s219, 0
    %s222 = sadd.s32 %s221, 1
    %s223 = scalar_select %p220, %s221, %s222
    %p226 = pneg %p220
    %p227 = scmp.eq.s32.totalorder %s17, 1
    %p228 = por %p226, %p227
    %p229 = scmp.ne.s32.totalorder %s221, %s224
    %p230 = scmp.eq.s32.totalorder %s17, 0
    %p231 = por %p229, %p230
    %p232 = scmp.ne.s32.totalorder %s221, %s224
    %p233 = scmp.eq.s32.totalorder %s22, 1
    %p234 = por %p232, %p233
    %p235 = scmp.ne.s32.totalorder %s224, %s225
    %p236 = scmp.eq.s32.totalorder %s22, 0
    %p237 = por %p235, %p236
    %p238 = scmp.ne.s32.totalorder %s224, %s225
    %p239 = scmp.eq.s32.totalorder %s23, 1
    %p240 = por %p238, %p239
    %p242 = scmp.ne.s32.totalorder %s225, %s241
    %p243 = scmp.eq.s32.totalorder %s23, 0
    %p244 = por %p242, %p243
    %s245 = ssub.s32 %s17, %s24
    %p246 = scmp.eq.s32.totalorder %s245, 0
    %s248 = sadd.s32 %s247, 1
    %s249 = scalar_select %p246, %s247, %s248
    %p252 = pneg %p246
    %p253 = scmp.eq.s32.totalorder %s17, 1
    %p254 = por %p252, %p253
    %p255 = scmp.ne.s32.totalorder %s247, %s250
    %p256 = scmp.eq.s32.totalorder %s17, 0
    %p257 = por %p255, %p256
    %p258 = scmp.ne.s32.totalorder %s247, %s250
    %p259 = scmp.eq.s32.totalorder %s22, 1
    %p260 = por %p258, %p259
    %p261 = scmp.ne.s32.totalorder %s250, %s251
    %p262 = scmp.eq.s32.totalorder %s22, 0
    %p263 = por %p261, %p262
    %p264 = scmp.ne.s32.totalorder %s250, %s251
    %p265 = scmp.eq.s32.totalorder %s23, 1
    %p266 = por %p264, %p265
    %p268 = scmp.ne.s32.totalorder %s251, %s267
    %p269 = scmp.eq.s32.totalorder %s23, 0
    %p270 = por %p268, %p269
    %p271 = scmp.le.s32.totalorder 1, %s17
    %p272 = scmp.lt.s32.totalorder %s17, 3
    %p273 = pnand %p271, %p272
    %p274 = pneg %p273
    // Predicated region
    $region9: #{bottleneck_residual_block.1} parent=5 // pred_check
      _
    $region10: #{bottleneck_residual_block.1} parent=5 // pred_check_branch
      %276 = sbr.rel (%p273) target = $region12
    $region11: #{bottleneck_residual_block.1} parent=5 // pred_region
      %s277 = ssub.s32 %s17, 1
      // Predicated region
      $region13: #{bottleneck_residual_block.1} parent=11 // pred_check
        %p278 = pneg %p64
      $region14: #{bottleneck_residual_block.1} parent=11 // pred_check_branch
        %280 = sbr.rel (%p278) target = $region16
      $region15: #{bottleneck_residual_block.1} parent=11 // pred_region
        _
      $region16: #{bottleneck_residual_block.1} parent=11 // pred_fallthru
        _
      // Predicated region
      $region17: #{bottleneck_residual_block.1} parent=11 // pred_check
        %p281 = pneg %p85
      $region18: #{bottleneck_residual_block.1} parent=11 // pred_check_branch
        %283 = sbr.rel (%p281) target = $region20
      $region19: #{bottleneck_residual_block.1} parent=11 // pred_region
        _
      $region20: #{bottleneck_residual_block.1} parent=11 // pred_fallthru
        _
      // Predicated region
      $region21: #{bottleneck_residual_block.1} parent=11 // pred_check
        %p284 = pneg %p106
      $region22: #{bottleneck_residual_block.1} parent=11 // pred_check_branch
        %286 = sbr.rel (%p284) target = $region24
      $region23: #{bottleneck_residual_block.1} parent=11 // pred_region
        _
      $region24: #{bottleneck_residual_block.1} parent=11 // pred_fallthru
        _
      // Predicated region
      $region25: #{bottleneck_residual_block.1} parent=11 // pred_check
        %p287 = pneg %p127
      $region26: #{bottleneck_residual_block.1} parent=11 // pred_check_branch
        %289 = sbr.rel (%p287) target = $region28
      $region27: #{bottleneck_residual_block.1} parent=11 // pred_region
        _
      $region28: #{bottleneck_residual_block.1} parent=11 // pred_fallthru
        _
      // Predicated region
      $region29: #{bottleneck_residual_block.1} parent=11 // pred_check
        %p290 = pneg %p148
      $region30: #{bottleneck_residual_block.1} parent=11 // pred_check_branch
        %292 = sbr.rel (%p290) target = $region32
      $region31: #{bottleneck_residual_block.1} parent=11 // pred_region
        _
      $region32: #{bottleneck_residual_block.1} parent=11 // pred_fallthru
        _
      // Predicated region
      $region33: #{bottleneck_residual_block.1} parent=11 // pred_check
        %p293 = pneg %p169
      $region34: #{bottleneck_residual_block.1} parent=11 // pred_check_branch
        %295 = sbr.rel (%p293) target = $region36
      $region35: #{bottleneck_residual_block.1} parent=11 // pred_region
        _
      $region36: #{bottleneck_residual_block.1} parent=11 // pred_fallthru
        _
      // Predicated region
      $region37: #{bottleneck_residual_block.1} parent=11 // pred_check
        %p296 = pneg %p190
      $region38: #{bottleneck_residual_block.1} parent=11 // pred_check_branch
        %298 = sbr.rel (%p296) target = $region40
      $region39: #{bottleneck_residual_block.1} parent=11 // pred_region
        _
      $region40: #{bottleneck_residual_block.1} parent=11 // pred_fallthru
        _
      // Predicated region
      $region41: #{bottleneck_residual_block.1} parent=11 // pred_check
        %p299 = pneg %p211
      $region42: #{bottleneck_residual_block.1} parent=11 // pred_check_branch
        %301 = sbr.rel (%p299) target = $region44
      $region43: #{bottleneck_residual_block.1} parent=11 // pred_region
        _
      $region44: #{bottleneck_residual_block.1} parent=11 // pred_fallthru
        _
    $region12: #{bottleneck_residual_block.1} parent=5 // pred_fallthru
      _
    %p302 = scmp.lt.s32.totalorder %s17, 2
    // Predicated region
    $region45: #{bottleneck_residual_block.1} parent=5 // pred_check
      %p303 = pneg %p302
    $region46: #{bottleneck_residual_block.1} parent=5 // pred_check_branch
      %305 = sbr.rel (%p303) target = $region48
    $region47: #{bottleneck_residual_block.1} parent=5 // pred_region
      // Predicated region
      $region49: #{bottleneck_residual_block.1} parent=47 // pred_check
        %p306 = pneg %p37
      $region50: #{bottleneck_residual_block.1} parent=47 // pred_check_branch
        %308 = sbr.rel (%p306) target = $region52
      $region51: #{bottleneck_residual_block.1} parent=47 // pred_region
        %p309 = scmp.lt.s32.totalorder %s17, 1
        %s310 = scalar_select %p309, %s17, 1
        %s311 = smul.addr %s310, 32
        %s312 = smul.addr %s311, 4
        %s313 = scalar_lea.vmem %s0, %s312
      $region52: #{bottleneck_residual_block.1} parent=47 // pred_fallthru
        _
    $region48: #{bottleneck_residual_block.1} parent=5 // pred_fallthru
      _
    %p314 = scmp.le.s32.totalorder 1, %s17
    %p315 = scmp.lt.s32.totalorder %s17, 3
    %p316 = pnand %p314, %p315
    %p317 = pneg %p316
    // Predicated region
    $region53: #{bottleneck_residual_block.1} parent=5 // pred_check
      _
    $region54: #{bottleneck_residual_block.1} parent=5 // pred_check_branch
      %319 = sbr.rel (%p316) target = $region56
    $region55: #{bottleneck_residual_block.1} parent=5 // pred_region
      %s320 = ssub.s32 %s17, 1
      %p321 = scmp.lt.s32.totalorder %s22, 1
      %s322 = scalar_select %p321, %s22, 1
      %s323 = smul.addr %s322, 32
      %s324 = smul.addr %s323, 4
      %s325 = scalar_lea.vmem %s0, %s324
      %p326 = pneg %p43
      %p327 = pneg %p40
      %p328 = pneg %p64
      %p329 = pneg %p61
      %p330 = pneg %p85
      %p331 = pneg %p82
      %p332 = pneg %p106
      %p333 = pneg %p103
      %p334 = pneg %p127
      %p335 = pneg %p124
      %p336 = pneg %p148
      %p337 = pneg %p145
      %p338 = pneg %p169
      %p339 = pneg %p166
      %p340 = pneg %p190
      %p341 = pneg %p187
      %p342 = pneg %p211
      %p343 = pneg %p208
      %p344 = pneg %p237
      %p345 = pneg %p234
      %p346 = scmp.lt.s32.totalorder %s22, 1
      %s347 = scalar_select %p346, %s22, 1
      %s348 = smul.addr %s347, 8
      %s349 = smul.addr %s348, 8
      %s350 = scalar_lea.vmem %s9, %s349
      %p351 = pneg %p263
      %p352 = pneg %p260
      %p353 = scmp.lt.s32.totalorder %s22, 1
      %s354 = scalar_select %p353, %s22, 1
      %s355 = smul.addr %s354, 8
      %s356 = smul.addr %s355, 8
      %s357 = scalar_lea.vmem %s10, %s356
      %p358 = scmp.lt.s32.totalorder %s22, 1
      %s359 = scalar_select %p358, %s22, 1
      %s360 = smul.addr %s359, 32
      %s361 = smul.addr %s360, 4
      %s362 = scalar_lea.vmem %s0, %s361
      %p363 = scmp.lt.s32.totalorder %s22, 1
      %s364 = scalar_select %p363, %s22, 1
      %s365 = smul.addr %s364, 8
      %s366 = smul.addr %s365, 8
      %s367 = scalar_lea.vmem %s9, %s366
      %p368 = scmp.lt.s32.totalorder %s22, 1
      %s369 = scalar_select %p368, %s22, 1
      %s370 = smul.addr %s369, 8
      %s371 = smul.addr %s370, 8
      %s372 = scalar_lea.vmem %s10, %s371
      %v373 = vld [vmem:[%s362] sm:$0xf]
      %v374 = vld [vmem:[%s362 + $0x4] sm:$0xf]
      %v375 = vld [vmem:[%s362 + $0x8] sm:$0xf]
      %v376 = vld [vmem:[%s362 + $0xc] sm:$0xf]
      %v377 = vld [vmem:[%s362 + $0x10] sm:$0xf]
      %v378 = vld [vmem:[%s362 + $0x14] sm:$0xf]
      %v379 = vld [vmem:[%s362 + $0x18] sm:$0xf]
      %v380 = vld [vmem:[%s362 + $0x1c] sm:$0xf]
      %v381 = vld [vmem:[%s362 + $0x20] sm:$0xf]
      %v382 = vld [vmem:[%s362 + $0x24] sm:$0xf]
      %v383 = vld [vmem:[%s362 + $0x28] sm:$0xf]
      %v384 = vld [vmem:[%s362 + $0x2c] sm:$0xf]
      %v385 = vld [vmem:[%s362 + $0x30] sm:$0xf]
      %v386 = vld [vmem:[%s362 + $0x34] sm:$0xf]
      %v387 = vld [vmem:[%s362 + $0x38] sm:$0xf]
      %v388 = vld [vmem:[%s362 + $0x3c] sm:$0xf]
      %v389 = vld [vmem:[%s362 + $0x40] sm:$0xf]
      %v390 = vld [vmem:[%s362 + $0x44] sm:$0xf]
      %v391 = vld [vmem:[%s362 + $0x48] sm:$0xf]
      %v392 = vld [vmem:[%s362 + $0x4c] sm:$0xf]
      %v393 = vld [vmem:[%s362 + $0x50] sm:$0xf]
      %v394 = vld [vmem:[%s362 + $0x54] sm:$0xf]
      %v395 = vld [vmem:[%s362 + $0x58] sm:$0xf]
      %v396 = vld [vmem:[%s362 + $0x5c] sm:$0xf]
      %v397 = vld [vmem:[%s362 + $0x60] sm:$0xf]
      %v398 = vld [vmem:[%s362 + $0x64] sm:$0xf]
      %v399 = vld [vmem:[%s362 + $0x68] sm:$0xf]
      %v400 = vld [vmem:[%s362 + $0x6c] sm:$0xf]
      %v401 = vld [vmem:[%s362 + $0x70] sm:$0xf]
      %v402 = vld [vmem:[%s362 + $0x74] sm:$0xf]
      %v403 = vld [vmem:[%s362 + $0x78] sm:$0xf]
      %v404 = vld [vmem:[%s362 + $0x7c] sm:$0xf]
      %v405 = vld [vmem:[%s1] sm:$0xf]
      %v406 = vld [vmem:[%s1 + $0x4] sm:$0xf]
      %v407 = vld [vmem:[%s1 + $0x8] sm:$0xf]
      %v408 = vld [vmem:[%s1 + $0xc] sm:$0xf]
      %v409 = vld [vmem:[%s1 + $0x10] sm:$0xf]
      %v410 = vld [vmem:[%s1 + $0x14] sm:$0xf]
      %v411 = vld [vmem:[%s1 + $0x18] sm:$0xf]
      %v412 = vld [vmem:[%s1 + $0x1c] sm:$0xf]
      %v413 = vld [vmem:[%s1 + $0x20] sm:$0xf]
      %v414 = vld [vmem:[%s1 + $0x24] sm:$0xf]
      %v415 = vld [vmem:[%s1 + $0x28] sm:$0xf]
      %v416 = vld [vmem:[%s1 + $0x2c] sm:$0xf]
      %v417 = vld [vmem:[%s1 + $0x30] sm:$0xf]
      %v418 = vld [vmem:[%s1 + $0x34] sm:$0xf]
      %v419 = vld [vmem:[%s1 + $0x38] sm:$0xf]
      %v420 = vld [vmem:[%s1 + $0x3c] sm:$0xf]
      %v421 = vld [vmem:[%s2] sm:$0x1]
      %v423 = vperm.slane %v421, 0
      %v457 = vunpack.c.l.b16 %v373
      %v458 = vunpack.c.l.b16 %v374
      %v459 = vunpack.c.l.b16 %v375
      %v460 = vunpack.c.l.b16 %v376
      %v461 = vunpack.c.l.b16 %v377
      %v462 = vunpack.c.l.b16 %v378
      %v463 = vunpack.c.l.b16 %v379
      %v464 = vunpack.c.l.b16 %v380
      %v465 = vunpack.c.l.b16 %v381
      %v466 = vunpack.c.l.b16 %v382
      %v467 = vunpack.c.l.b16 %v383
      %v468 = vunpack.c.l.b16 %v384
      %v469 = vunpack.c.l.b16 %v385
      %v470 = vunpack.c.l.b16 %v386
      %v471 = vunpack.c.l.b16 %v387
      %v472 = vunpack.c.l.b16 %v388
      %v473 = vunpack.c.l.b16 %v389
      %v474 = vunpack.c.l.b16 %v390
      %v475 = vunpack.c.l.b16 %v391
      %v476 = vunpack.c.l.b16 %v392
      %v477 = vunpack.c.l.b16 %v393
      %v478 = vunpack.c.l.b16 %v394
      %v479 = vunpack.c.l.b16 %v395
      %v480 = vunpack.c.l.b16 %v396
      %v481 = vunpack.c.l.b16 %v397
      %v482 = vunpack.c.l.b16 %v398
      %v483 = vunpack.c.l.b16 %v399
      %v484 = vunpack.c.l.b16 %v400
      %v485 = vunpack.c.l.b16 %v401
      %v486 = vunpack.c.l.b16 %v402
      %v487 = vunpack.c.l.b16 %v403
      %v488 = vunpack.c.l.b16 %v404
      %v489 = vpack.c.b16 %v458, %v457
      %v490 = vpack.c.b16 %v460, %v459
      %v491 = vpack.c.b16 %v462, %v461
      %v492 = vpack.c.b16 %v464, %v463
      %v493 = vpack.c.b16 %v466, %v465
      %v494 = vpack.c.b16 %v468, %v467
      %v495 = vpack.c.b16 %v470, %v469
      %v496 = vpack.c.b16 %v472, %v471
      %v497 = vpack.c.b16 %v474, %v473
      %v498 = vpack.c.b16 %v476, %v475
      %v499 = vpack.c.b16 %v478, %v477
      %v500 = vpack.c.b16 %v480, %v479
      %v501 = vpack.c.b16 %v482, %v481
      %v502 = vpack.c.b16 %v484, %v483
      %v503 = vpack.c.b16 %v486, %v485
      %v504 = vpack.c.b16 %v488, %v487
      %v537 = vunpack.c.l.b16 %v405
      %v538 = vunpack.c.l.b16 %v406
      %v539 = vunpack.c.l.b16 %v407
      %v540 = vunpack.c.l.b16 %v408
      %v541 = vunpack.c.l.b16 %v409
      %v542 = vunpack.c.l.b16 %v410
      %v543 = vunpack.c.l.b16 %v411
      %v544 = vunpack.c.l.b16 %v412
      %v545 = vunpack.c.l.b16 %v413
      %v546 = vunpack.c.l.b16 %v414
      %v547 = vunpack.c.l.b16 %v415
      %v548 = vunpack.c.l.b16 %v416
      %v549 = vunpack.c.l.b16 %v417
      %v550 = vunpack.c.l.b16 %v418
      %v551 = vunpack.c.l.b16 %v419
      %v552 = vunpack.c.l.b16 %v420
      %v553 = vpack.c.b16 %v538, %v537
      %v554 = vpack.c.b16 %v540, %v539
      %v555 = vpack.c.b16 %v542, %v541
      %v556 = vpack.c.b16 %v544, %v543
      %v557 = vpack.c.b16 %v546, %v545
      %v558 = vpack.c.b16 %v548, %v547
      %v559 = vpack.c.b16 %v550, %v549
      %v560 = vpack.c.b16 %v552, %v551
      %569 = vmatpush.bf16.msra.mxu0 %v560
      %570 = vmatpush.bf16.msra.mxu0 %v559
      %571 = vmatpush.bf16.msra.mxu0 %v558
      %572 = vmatpush.bf16.msra.mxu0 %v557
      %573 = vmatpush.bf16.msra.mxu0 %v556
      %574 = vmatpush.bf16.msra.mxu0 %v555
      %575 = vmatpush.bf16.msra.mxu0 %v554
      %576 = vmatpush.bf16.msra.mxu0 %v553
      %577 = vmatmul.bf16.gmra.mxu0 %v489
      %v578 = vpop.f32.mrf.mxu0
      %v579 = vadd.f32 %v423, %v578
      %v580 = vpop.f32.mrf.mxu0
      %v581 = vadd.f32 %v423, %v580
      %582 = vmatmul.bf16.gmra.mxu0 %v490
      %v583 = vpop.f32.mrf.mxu0
      %v584 = vadd.f32 %v423, %v583
      %v585 = vpop.f32.mrf.mxu0
      %v586 = vadd.f32 %v423, %v585
      %587 = vmatmul.bf16.gmra.mxu0 %v491
      %v588 = vpop.f32.mrf.mxu0
      %v589 = vadd.f32 %v423, %v588
      %v590 = vpop.f32.mrf.mxu0
      %v591 = vadd.f32 %v423, %v590
      %592 = vmatmul.bf16.gmra.mxu0 %v492
      %v593 = vpop.f32.mrf.mxu0
      %v594 = vadd.f32 %v423, %v593
      %v595 = vpop.f32.mrf.mxu0
      %v596 = vadd.f32 %v423, %v595
      %597 = vmatmul.bf16.gmra.mxu0 %v493
      %v598 = vpop.f32.mrf.mxu0
      %v599 = vadd.f32 %v423, %v598
      %v600 = vpop.f32.mrf.mxu0
      %v601 = vadd.f32 %v423, %v600
      %602 = vmatmul.bf16.gmra.mxu0 %v494
      %v603 = vpop.f32.mrf.mxu0
      %v604 = vadd.f32 %v423, %v603
      %v605 = vpop.f32.mrf.mxu0
      %v606 = vadd.f32 %v423, %v605
      %607 = vmatmul.bf16.gmra.mxu0 %v495
      %v608 = vpop.f32.mrf.mxu0
      %v609 = vadd.f32 %v423, %v608
      %v610 = vpop.f32.mrf.mxu0
      %v611 = vadd.f32 %v423, %v610
      %612 = vmatmul.bf16.gmra.mxu0 %v496
      %v613 = vpop.f32.mrf.mxu0
      %v614 = vadd.f32 %v423, %v613
      %v615 = vpop.f32.mrf.mxu0
      %v616 = vadd.f32 %v423, %v615
      %617 = vmatmul.bf16.gmra.mxu0 %v497
      %v618 = vpop.f32.mrf.mxu0
      %v619 = vadd.f32 %v423, %v618
      %v620 = vpop.f32.mrf.mxu0
      %v621 = vadd.f32 %v423, %v620
      %622 = vmatmul.bf16.gmra.mxu0 %v498
      %v623 = vpop.f32.mrf.mxu0
      %v624 = vadd.f32 %v423, %v623
      %v625 = vpop.f32.mrf.mxu0
      %v626 = vadd.f32 %v423, %v625
      %627 = vmatmul.bf16.gmra.mxu0 %v499
      %v628 = vpop.f32.mrf.mxu0
      %v629 = vadd.f32 %v423, %v628
      %v630 = vpop.f32.mrf.mxu0
      %v631 = vadd.f32 %v423, %v630
      %632 = vmatmul.bf16.gmra.mxu0 %v500
      %v633 = vpop.f32.mrf.mxu0
      %v634 = vadd.f32 %v423, %v633
      %v635 = vpop.f32.mrf.mxu0
      %v636 = vadd.f32 %v423, %v635
      %637 = vmatmul.bf16.gmra.mxu0 %v501
      %v638 = vpop.f32.mrf.mxu0
      %v639 = vadd.f32 %v423, %v638
      %v640 = vpop.f32.mrf.mxu0
      %v641 = vadd.f32 %v423, %v640
      %642 = vmatmul.bf16.gmra.mxu0 %v502
      %v643 = vpop.f32.mrf.mxu0
      %v644 = vadd.f32 %v423, %v643
      %v645 = vpop.f32.mrf.mxu0
      %v646 = vadd.f32 %v423, %v645
      %647 = vmatmul.bf16.gmra.mxu0 %v503
      %v648 = vpop.f32.mrf.mxu0
      %v649 = vadd.f32 %v423, %v648
      %v650 = vpop.f32.mrf.mxu0
      %v651 = vadd.f32 %v423, %v650
      %652 = vmatmul.bf16.gmra.mxu0 %v504
      %v653 = vpop.f32.mrf.mxu0
      %v654 = vadd.f32 %v423, %v653
      %v655 = vpop.f32.mrf.mxu0
      %v656 = vadd.f32 %v423, %v655
      %657 = vdwg.mxu0
      %v658 = vmax.f32 %v579, 0.0
      %v659 = vmax.f32 %v581, 0.0
      %v660 = vmax.f32 %v584, 0.0
      %v661 = vmax.f32 %v586, 0.0
      %v662 = vmax.f32 %v589, 0.0
      %v663 = vmax.f32 %v591, 0.0
      %v664 = vmax.f32 %v594, 0.0
      %v665 = vmax.f32 %v596, 0.0
      %v666 = vmax.f32 %v599, 0.0
      %v667 = vmax.f32 %v601, 0.0
      %v668 = vmax.f32 %v604, 0.0
      %v669 = vmax.f32 %v606, 0.0
      %v670 = vmax.f32 %v609, 0.0
      %v671 = vmax.f32 %v611, 0.0
      %v672 = vmax.f32 %v614, 0.0
      %v673 = vmax.f32 %v616, 0.0
      %v674 = vmax.f32 %v619, 0.0
      %v675 = vmax.f32 %v621, 0.0
      %v676 = vmax.f32 %v624, 0.0
      %v677 = vmax.f32 %v626, 0.0
      %v678 = vmax.f32 %v629, 0.0
      %v679 = vmax.f32 %v631, 0.0
      %v680 = vmax.f32 %v634, 0.0
      %v681 = vmax.f32 %v636, 0.0
      %v682 = vmax.f32 %v639, 0.0
      %v683 = vmax.f32 %v641, 0.0
      %v684 = vmax.f32 %v644, 0.0
      %v685 = vmax.f32 %v646, 0.0
      %v686 = vmax.f32 %v649, 0.0
      %v687 = vmax.f32 %v651, 0.0
      %v688 = vmax.f32 %v654, 0.0
      %v689 = vmax.f32 %v656, 0.0
      %v690 = vpack.c.bf16 %v658, %v658
      %v691 = vpack.c.bf16 %v659, %v659
      %v692 = vpack.c.bf16 %v660, %v660
      %v693 = vpack.c.bf16 %v661, %v661
      %v694 = vpack.c.bf16 %v662, %v662
      %v695 = vpack.c.bf16 %v663, %v663
      %v696 = vpack.c.bf16 %v664, %v664
      %v697 = vpack.c.bf16 %v665, %v665
      %v698 = vpack.c.bf16 %v666, %v666
      %v699 = vpack.c.bf16 %v667, %v667
      %v700 = vpack.c.bf16 %v668, %v668
      %v701 = vpack.c.bf16 %v669, %v669
      %v702 = vpack.c.bf16 %v670, %v670
      %v703 = vpack.c.bf16 %v671, %v671
      %v704 = vpack.c.bf16 %v672, %v672
      %v705 = vpack.c.bf16 %v673, %v673
      %v706 = vpack.c.bf16 %v674, %v674
      %v707 = vpack.c.bf16 %v675, %v675
      %v708 = vpack.c.bf16 %v676, %v676
      %v709 = vpack.c.bf16 %v677, %v677
      %v710 = vpack.c.bf16 %v678, %v678
      %v711 = vpack.c.bf16 %v679, %v679
      %v712 = vpack.c.bf16 %v680, %v680
      %v713 = vpack.c.bf16 %v681, %v681
      %v714 = vpack.c.bf16 %v682, %v682
      %v715 = vpack.c.bf16 %v683, %v683
      %v716 = vpack.c.bf16 %v684, %v684
      %v717 = vpack.c.bf16 %v685, %v685
      %v718 = vpack.c.bf16 %v686, %v686
      %v719 = vpack.c.bf16 %v687, %v687
      %v720 = vpack.c.bf16 %v688, %v688
      %v721 = vpack.c.bf16 %v689, %v689
      %v722 = vlaneseq
      %v723 = vshrl.u32 %v722, 7
      %v724 = vadd.s32 %v723, 8
      %v725 = vadd.s32 %v723, 16
      %v726 = vadd.s32 %v723, 24
      %v727 = vadd.s32 %v723, 32
      %v728 = vadd.s32 %v723, 40
      %v729 = vadd.s32 %v723, 48
      %v730 = vadd.s32 %v723, 56
      %vm731 = vcmp.ge.s32.totalorder %v723, 8
      %vm732 = vcmp.ge.s32.totalorder %v724, 8
      %vm733 = vcmp.ge.s32.totalorder %v725, 8
      %vm734 = vcmp.ge.s32.totalorder %v726, 8
      %vm735 = vcmp.ge.s32.totalorder %v727, 8
      %vm736 = vcmp.ge.s32.totalorder %v728, 8
      %vm737 = vcmp.ge.s32.totalorder %v729, 8
      %vm738 = vcmp.ge.s32.totalorder %v730, 8
      %vm739 = vcmp.lt.s32.totalorder %v723, 0
      %v740 = vsub.s32 0, %v723
      %v741 = vsel %vm739, %v740, %v723
      %v742 = vshrl.u32 %v741, 3
      %v743 = vand.u32 %v741, 7
      %v744 = vsub.s32 0, %v743
      %v745 = vsel %vm739, %v744, %v743
      %vm746 = vcmp.lt.s32.totalorder %v724, 0
      %v747 = vsub.s32 0, %v724
      %v748 = vsel %vm746, %v747, %v724
      %v749 = vshrl.u32 %v748, 3
      %v750 = vand.u32 %v748, 7
      %v751 = vsub.s32 0, %v750
      %v752 = vsel %vm746, %v751, %v750
      %vm753 = vcmp.lt.s32.totalorder %v725, 0
      %v754 = vsub.s32 0, %v725
      %v755 = vsel %vm753, %v754, %v725
      %v756 = vshrl.u32 %v755, 3
      %v757 = vand.u32 %v755, 7
      %v758 = vsub.s32 0, %v757
      %v759 = vsel %vm753, %v758, %v757
      %vm760 = vcmp.lt.s32.totalorder %v726, 0
      %v761 = vsub.s32 0, %v726
      %v762 = vsel %vm760, %v761, %v726
      %v763 = vshrl.u32 %v762, 3
      %v764 = vand.u32 %v762, 7
      %v765 = vsub.s32 0, %v764
      %v766 = vsel %vm760, %v765, %v764
      %vm767 = vcmp.lt.s32.totalorder %v727, 0
      %v768 = vsub.s32 0, %v727
      %v769 = vsel %vm767, %v768, %v727
      %v770 = vshrl.u32 %v769, 3
      %v771 = vand.u32 %v769, 7
      %v772 = vsub.s32 0, %v771
      %v773 = vsel %vm767, %v772, %v771
      %vm774 = vcmp.lt.s32.totalorder %v728, 0
      %v775 = vsub.s32 0, %v728
      %v776 = vsel %vm774, %v775, %v728
      %v777 = vshrl.u32 %v776, 3
      %v778 = vand.u32 %v776, 7
      %v779 = vsub.s32 0, %v778
      %v780 = vsel %vm774, %v779, %v778
      %vm781 = vcmp.lt.s32.totalorder %v729, 0
      %v782 = vsub.s32 0, %v729
      %v783 = vsel %vm781, %v782, %v729
      %v784 = vshrl.u32 %v783, 3
      %v785 = vand.u32 %v783, 7
      %v786 = vsub.s32 0, %v785
      %v787 = vsel %vm781, %v786, %v785
      %vm788 = vcmp.lt.s32.totalorder %v730, 0
      %v789 = vsub.s32 0, %v730
      %v790 = vsel %vm788, %v789, %v730
      %v791 = vshrl.u32 %v790, 3
      %v792 = vand.u32 %v790, 7
      %v793 = vsub.s32 0, %v792
      %v794 = vsel %vm788, %v793, %v792
      %vm795 = vcmp.ne.s32.totalorder %v745, 0
      %vm796 = vcmp.ne.s32.totalorder %v752, 0
      %vm797 = vcmp.ne.s32.totalorder %v759, 0
      %vm798 = vcmp.ne.s32.totalorder %v766, 0
      %vm799 = vcmp.ne.s32.totalorder %v773, 0
      %vm800 = vcmp.ne.s32.totalorder %v780, 0
      %vm801 = vcmp.ne.s32.totalorder %v787, 0
      %vm802 = vcmp.ne.s32.totalorder %v794, 0
      %v803 = vld [vmem:[%s3] sm:$0xf]
      %v804 = vld [vmem:[%s3 + $0x4] sm:$0xf]
      %v805 = vld [vmem:[%s3 + $0x8] sm:$0xf]
      %v806 = vld [vmem:[%s3 + $0xc] sm:$0xf]
      %v807 = vld [vmem:[%s3 + $0x10] sm:$0xf]
      %v808 = vld [vmem:[%s3 + $0x14] sm:$0xf]
      %v809 = vld [vmem:[%s3 + $0x18] sm:$0xf]
      %v810 = vld [vmem:[%s3 + $0x1c] sm:$0xf]
      %v811 = vld [vmem:[%s3 + $0x20] sm:$0xf]
      %v812 = vld [vmem:[%s3 + $0x24] sm:$0xf]
      %v813 = vld [vmem:[%s3 + $0x28] sm:$0xf]
      %v814 = vld [vmem:[%s3 + $0x2c] sm:$0xf]
      %v815 = vld [vmem:[%s3 + $0x30] sm:$0xf]
      %v816 = vld [vmem:[%s3 + $0x34] sm:$0xf]
      %v817 = vld [vmem:[%s3 + $0x38] sm:$0xf]
      %v818 = vld [vmem:[%s3 + $0x3c] sm:$0xf]
      %v827 = vunpack.c.l.b16 %v714
      %v828 = vunpack.c.l.b16 %v715
      %v829 = vunpack.c.l.b16 %v716
      %v830 = vunpack.c.l.b16 %v717
      %v831 = vunpack.c.l.b16 %v718
      %v832 = vunpack.c.l.b16 %v719
      %v833 = vunpack.c.l.b16 %v720
      %v834 = vunpack.c.l.b16 %v721
      %v835 = vpack.c.b16 %v828, %v827
      %v836 = vpack.c.b16 %v830, %v829
      %v837 = vpack.c.b16 %v832, %v831
      %v838 = vpack.c.b16 %v834, %v833
      %v859 = vunpack.c.l.b16 %v803
      %v860 = vunpack.c.l.b16 %v804
      %v861 = vunpack.c.l.b16 %v805
      %v862 = vunpack.c.l.b16 %v806
      %v863 = vunpack.c.l.b16 %v807
      %v864 = vunpack.c.l.b16 %v808
      %v865 = vunpack.c.l.b16 %v809
      %v866 = vunpack.c.l.b16 %v810
      %v867 = vunpack.c.l.b16 %v811
      %v868 = vunpack.c.l.b16 %v812
      %v869 = vunpack.c.l.b16 %v813
      %v870 = vunpack.c.l.b16 %v814
      %v871 = vunpack.c.l.b16 %v815
      %v872 = vunpack.c.l.b16 %v816
      %v873 = vunpack.c.l.b16 %v817
      %v874 = vunpack.c.l.b16 %v818
      %v875 = vpack.c.b16 %v860, %v859
      %v876 = vpack.c.b16 %v862, %v861
      %v877 = vpack.c.b16 %v864, %v863
      %v878 = vpack.c.b16 %v866, %v865
      %v879 = vpack.c.b16 %v868, %v867
      %v880 = vpack.c.b16 %v870, %v869
      %v881 = vpack.c.b16 %v872, %v871
      %v882 = vpack.c.b16 %v874, %v873
      %891 = vmatpush.bf16.msra.mxu0 %v882
      %892 = vmatpush.bf16.msra.mxu0 %v881
      %893 = vmatpush.bf16.msra.mxu0 %v880
      %894 = vmatpush.bf16.msra.mxu0 %v879
      %895 = vmatpush.bf16.msra.mxu0 %v878
      %896 = vmatpush.bf16.msra.mxu0 %v877
      %897 = vmatpush.bf16.msra.mxu0 %v876
      %898 = vmatpush.bf16.msra.mxu0 %v875
      %899 = vmatmul.bf16.gmra.mxu0 %v835
      %v900 = vpop.f32.mrf.mxu0
      %v901 = vadd.f32 0.0, %v900
      %v902 = vpop.f32.mrf.mxu0
      %v903 = vadd.f32 0.0, %v902
      %904 = vmatmul.bf16.gmra.mxu0 %v836
      %v905 = vpop.f32.mrf.mxu0
      %v906 = vadd.f32 0.0, %v905
      %v907 = vpop.f32.mrf.mxu0
      %v908 = vadd.f32 0.0, %v907
      %909 = vmatmul.bf16.gmra.mxu0 %v837
      %v910 = vpop.f32.mrf.mxu0
      %v911 = vadd.f32 0.0, %v910
      %v912 = vpop.f32.mrf.mxu0
      %v913 = vadd.f32 0.0, %v912
      %914 = vmatmul.bf16.gmra.mxu0 %v838
      %v915 = vpop.f32.mrf.mxu0
      %v916 = vadd.f32 0.0, %v915
      %v917 = vpop.f32.mrf.mxu0
      %v918 = vadd.f32 0.0, %v917
      %919 = vdwg.mxu0
      %v920 = vrot.slane %v901, 7
      %v921 = vrot.slane %v903, 7
      %v922 = vrot.slane %v906, 7
      %v923 = vrot.slane %v908, 7
      %v924 = vrot.slane %v911, 7
      %v925 = vrot.slane %v913, 7
      %v926 = vrot.slane %v916, 7
      %v927 = vrot.slane %v918, 7
      %vm928 = vcmp.lt.s32.totalorder %v723, 1
      %v929 = vsel %vm928, %v926, %v927
      %v930 = vsel %vm928, %v925, %v926
      %v931 = vsel %vm928, %v924, %v925
      %v932 = vsel %vm928, %v923, %v924
      %v933 = vsel %vm928, %v922, %v923
      %v934 = vsel %vm928, %v921, %v922
      %v935 = vsel %vm928, %v920, %v921
      %v936 = vsel %vm928, %v927, %v920
      %vm937 = vmand %vm731, %vm795
      %vm938 = vmand %vm732, %vm796
      %vm939 = vmand %vm733, %vm797
      %vm940 = vmand %vm734, %vm798
      %vm941 = vmand %vm735, %vm799
      %vm942 = vmand %vm736, %vm800
      %vm943 = vmand %vm737, %vm801
      %vm944 = vmand %vm738, %vm802
      %v945 = vsel %vm937, %v929, 0.0
      %v946 = vsel %vm938, %v936, 0.0
      %v947 = vsel %vm939, %v935, 0.0
      %v948 = vsel %vm940, %v934, 0.0
      %v949 = vsel %vm941, %v933, 0.0
      %v950 = vsel %vm942, %v932, 0.0
      %v951 = vsel %vm943, %v931, 0.0
      %v952 = vsel %vm944, %v930, 0.0
      %v953 = vadd.f32 %v945, 0.0
      %v954 = vadd.f32 %v946, 0.0
      %v955 = vadd.f32 %v947, 0.0
      %v956 = vadd.f32 %v948, 0.0
      %v957 = vadd.f32 %v949, 0.0
      %v958 = vadd.f32 %v950, 0.0
      %v959 = vadd.f32 %v951, 0.0
      %v960 = vadd.f32 %v952, 0.0
      %s961 = scalar_lea.vmem %s3, 64
      %v962 = vld [vmem:[%s961] sm:$0xf]
      %v963 = vld [vmem:[%s961 + $0x4] sm:$0xf]
      %v964 = vld [vmem:[%s961 + $0x8] sm:$0xf]
      %v965 = vld [vmem:[%s961 + $0xc] sm:$0xf]
      %v966 = vld [vmem:[%s961 + $0x10] sm:$0xf]
      %v967 = vld [vmem:[%s961 + $0x14] sm:$0xf]
      %v968 = vld [vmem:[%s961 + $0x18] sm:$0xf]
      %v969 = vld [vmem:[%s961 + $0x1c] sm:$0xf]
      %v970 = vld [vmem:[%s961 + $0x20] sm:$0xf]
      %v971 = vld [vmem:[%s961 + $0x24] sm:$0xf]
      %v972 = vld [vmem:[%s961 + $0x28] sm:$0xf]
      %v973 = vld [vmem:[%s961 + $0x2c] sm:$0xf]
      %v974 = vld [vmem:[%s961 + $0x30] sm:$0xf]
      %v975 = vld [vmem:[%s961 + $0x34] sm:$0xf]
      %v976 = vld [vmem:[%s961 + $0x38] sm:$0xf]
      %v977 = vld [vmem:[%s961 + $0x3c] sm:$0xf]
      %v986 = vunpack.c.l.b16 %v706
      %v987 = vunpack.c.l.b16 %v707
      %v988 = vunpack.c.l.b16 %v708
      %v989 = vunpack.c.l.b16 %v709
      %v990 = vunpack.c.l.b16 %v710
      %v991 = vunpack.c.l.b16 %v711
      %v992 = vunpack.c.l.b16 %v712
      %v993 = vunpack.c.l.b16 %v713
      %v994 = vpack.c.b16 %v987, %v986
      %v995 = vpack.c.b16 %v989, %v988
      %v996 = vpack.c.b16 %v991, %v990
      %v997 = vpack.c.b16 %v993, %v992
      %v1018 = vunpack.c.l.b16 %v962
      %v1019 = vunpack.c.l.b16 %v963
      %v1020 = vunpack.c.l.b16 %v964
      %v1021 = vunpack.c.l.b16 %v965
      %v1022 = vunpack.c.l.b16 %v966
      %v1023 = vunpack.c.l.b16 %v967
      %v1024 = vunpack.c.l.b16 %v968
      %v1025 = vunpack.c.l.b16 %v969
      %v1026 = vunpack.c.l.b16 %v970
      %v1027 = vunpack.c.l.b16 %v971
      %v1028 = vunpack.c.l.b16 %v972
      %v1029 = vunpack.c.l.b16 %v973
      %v1030 = vunpack.c.l.b16 %v974
      %v1031 = vunpack.c.l.b16 %v975
      %v1032 = vunpack.c.l.b16 %v976
      %v1033 = vunpack.c.l.b16 %v977
      %v1034 = vpack.c.b16 %v1019, %v1018
      %v1035 = vpack.c.b16 %v1021, %v1020
      %v1036 = vpack.c.b16 %v1023, %v1022
      %v1037 = vpack.c.b16 %v1025, %v1024
      %v1038 = vpack.c.b16 %v1027, %v1026
      %v1039 = vpack.c.b16 %v1029, %v1028
      %v1040 = vpack.c.b16 %v1031, %v1030
      %v1041 = vpack.c.b16 %v1033, %v1032
      %1050 = vmatpush.bf16.msra.mxu0 %v1041
      %1051 = vmatpush.bf16.msra.mxu0 %v1040
      %1052 = vmatpush.bf16.msra.mxu0 %v1039
      %1053 = vmatpush.bf16.msra.mxu0 %v1038
      %1054 = vmatpush.bf16.msra.mxu0 %v1037
      %1055 = vmatpush.bf16.msra.mxu0 %v1036
      %1056 = vmatpush.bf16.msra.mxu0 %v1035
      %1057 = vmatpush.bf16.msra.mxu0 %v1034
      %1058 = vmatmul.bf16.gmra.mxu0 %v994
      %v1059 = vpop.f32.mrf.mxu0
      %v1060 = vadd.f32 0.0, %v1059
      %v1061 = vpop.f32.mrf.mxu0
      %v1062 = vadd.f32 0.0, %v1061
      %1063 = vmatmul.bf16.gmra.mxu0 %v995
      %v1064 = vpop.f32.mrf.mxu0
      %v1065 = vadd.f32 0.0, %v1064
      %v1066 = vpop.f32.mrf.mxu0
      %v1067 = vadd.f32 0.0, %v1066
      %1068 = vmatmul.bf16.gmra.mxu0 %v996
      %v1069 = vpop.f32.mrf.mxu0
      %v1070 = vadd.f32 0.0, %v1069
      %v1071 = vpop.f32.mrf.mxu0
      %v1072 = vadd.f32 0.0, %v1071
      %1073 = vmatmul.bf16.gmra.mxu0 %v997
      %v1074 = vpop.f32.mrf.mxu0
      %v1075 = vadd.f32 0.0, %v1074
      %v1076 = vpop.f32.mrf.mxu0
      %v1077 = vadd.f32 0.0, %v1076
      %1078 = vdwg.mxu0
      %v1079 = vsel %vm731, %v1077, 0.0
      %v1080 = vsel %vm732, %v1060, 0.0
      %v1081 = vsel %vm733, %v1062, 0.0
      %v1082 = vsel %vm734, %v1065, 0.0
      %v1083 = vsel %vm735, %v1067, 0.0
      %v1084 = vsel %vm736, %v1070, 0.0
      %v1085 = vsel %vm737, %v1072, 0.0
      %v1086 = vsel %vm738, %v1075, 0.0
      %v1087 = vadd.f32 %v953, %v1079
      %v1088 = vadd.f32 %v954, %v1080
      %v1089 = vadd.f32 %v955, %v1081
      %v1090 = vadd.f32 %v956, %v1082
      %v1091 = vadd.f32 %v957, %v1083
      %v1092 = vadd.f32 %v958, %v1084
      %v1093 = vadd.f32 %v959, %v1085
      %v1094 = vadd.f32 %v960, %v1086
      %s1095 = scalar_lea.vmem %s3, 128
      %v1096 = vld [vmem:[%s1095] sm:$0xf]
      %v1097 = vld [vmem:[%s1095 + $0x4] sm:$0xf]
      %v1098 = vld [vmem:[%s1095 + $0x8] sm:$0xf]
      %v1099 = vld [vmem:[%s1095 + $0xc] sm:$0xf]
      %v1100 = vld [vmem:[%s1095 + $0x10] sm:$0xf]
      %v1101 = vld [vmem:[%s1095 + $0x14] sm:$0xf]
      %v1102 = vld [vmem:[%s1095 + $0x18] sm:$0xf]
      %v1103 = vld [vmem:[%s1095 + $0x1c] sm:$0xf]
      %v1104 = vld [vmem:[%s1095 + $0x20] sm:$0xf]
      %v1105 = vld [vmem:[%s1095 + $0x24] sm:$0xf]
      %v1106 = vld [vmem:[%s1095 + $0x28] sm:$0xf]
      %v1107 = vld [vmem:[%s1095 + $0x2c] sm:$0xf]
      %v1108 = vld [vmem:[%s1095 + $0x30] sm:$0xf]
      %v1109 = vld [vmem:[%s1095 + $0x34] sm:$0xf]
      %v1110 = vld [vmem:[%s1095 + $0x38] sm:$0xf]
      %v1111 = vld [vmem:[%s1095 + $0x3c] sm:$0xf]
      %v1128 = vunpack.c.l.b16 %v1096
      %v1129 = vunpack.c.l.b16 %v1097
      %v1130 = vunpack.c.l.b16 %v1098
      %v1131 = vunpack.c.l.b16 %v1099
      %v1132 = vunpack.c.l.b16 %v1100
      %v1133 = vunpack.c.l.b16 %v1101
      %v1134 = vunpack.c.l.b16 %v1102
      %v1135 = vunpack.c.l.b16 %v1103
      %v1136 = vunpack.c.l.b16 %v1104
      %v1137 = vunpack.c.l.b16 %v1105
      %v1138 = vunpack.c.l.b16 %v1106
      %v1139 = vunpack.c.l.b16 %v1107
      %v1140 = vunpack.c.l.b16 %v1108
      %v1141 = vunpack.c.l.b16 %v1109
      %v1142 = vunpack.c.l.b16 %v1110
      %v1143 = vunpack.c.l.b16 %v1111
      %v1144 = vpack.c.b16 %v1129, %v1128
      %v1145 = vpack.c.b16 %v1131, %v1130
      %v1146 = vpack.c.b16 %v1133, %v1132
      %v1147 = vpack.c.b16 %v1135, %v1134
      %v1148 = vpack.c.b16 %v1137, %v1136
      %v1149 = vpack.c.b16 %v1139, %v1138
      %v1150 = vpack.c.b16 %v1141, %v1140
      %v1151 = vpack.c.b16 %v1143, %v1142
      %1160 = vmatpush.bf16.msra.mxu0 %v1151
      %1161 = vmatpush.bf16.msra.mxu0 %v1150
      %1162 = vmatpush.bf16.msra.mxu0 %v1149
      %1163 = vmatpush.bf16.msra.mxu0 %v1148
      %1164 = vmatpush.bf16.msra.mxu0 %v1147
      %1165 = vmatpush.bf16.msra.mxu0 %v1146
      %1166 = vmatpush.bf16.msra.mxu0 %v1145
      %1167 = vmatpush.bf16.msra.mxu0 %v1144
      %1168 = vmatmul.bf16.gmra.mxu0 %v835
      %v1169 = vpop.f32.mrf.mxu0
      %v1170 = vadd.f32 0.0, %v1169
      %v1171 = vpop.f32.mrf.mxu0
      %v1172 = vadd.f32 0.0, %v1171
      %1173 = vmatmul.bf16.gmra.mxu0 %v836
      %v1174 = vpop.f32.mrf.mxu0
      %v1175 = vadd.f32 0.0, %v1174
      %v1176 = vpop.f32.mrf.mxu0
      %v1177 = vadd.f32 0.0, %v1176
      %1178 = vmatmul.bf16.gmra.mxu0 %v837
      %v1179 = vpop.f32.mrf.mxu0
      %v1180 = vadd.f32 0.0, %v1179
      %v1181 = vpop.f32.mrf.mxu0
      %v1182 = vadd.f32 0.0, %v1181
      %1183 = vmatmul.bf16.gmra.mxu0 %v838
      %v1184 = vpop.f32.mrf.mxu0
      %v1185 = vadd.f32 0.0, %v1184
      %v1186 = vpop.f32.mrf.mxu0
      %v1187 = vadd.f32 0.0, %v1186
      %1188 = vdwg.mxu0
      %v1189 = vsel %vm731, %v1187, 0.0
      %v1190 = vsel %vm732, %v1170, 0.0
      %v1191 = vsel %vm733, %v1172, 0.0
      %v1192 = vsel %vm734, %v1175, 0.0
      %v1193 = vsel %vm735, %v1177, 0.0
      %v1194 = vsel %vm736, %v1180, 0.0
      %v1195 = vsel %vm737, %v1182, 0.0
      %v1196 = vsel %vm738, %v1185, 0.0
      %v1197 = vadd.f32 %v1087, %v1189
      %v1198 = vadd.f32 %v1088, %v1190
      %v1199 = vadd.f32 %v1089, %v1191
      %v1200 = vadd.f32 %v1090, %v1192
      %v1201 = vadd.f32 %v1091, %v1193
      %v1202 = vadd.f32 %v1092, %v1194
      %v1203 = vadd.f32 %v1093, %v1195
      %v1204 = vadd.f32 %v1094, %v1196
      %s1205 = scalar_lea.vmem %s3, 192
      %v1206 = vld [vmem:[%s1205] sm:$0xf]
      %v1207 = vld [vmem:[%s1205 + $0x4] sm:$0xf]
      %v1208 = vld [vmem:[%s1205 + $0x8] sm:$0xf]
      %v1209 = vld [vmem:[%s1205 + $0xc] sm:$0xf]
      %v1210 = vld [vmem:[%s1205 + $0x10] sm:$0xf]
      %v1211 = vld [vmem:[%s1205 + $0x14] sm:$0xf]
      %v1212 = vld [vmem:[%s1205 + $0x18] sm:$0xf]
      %v1213 = vld [vmem:[%s1205 + $0x1c] sm:$0xf]
      %v1214 = vld [vmem:[%s1205 + $0x20] sm:$0xf]
      %v1215 = vld [vmem:[%s1205 + $0x24] sm:$0xf]
      %v1216 = vld [vmem:[%s1205 + $0x28] sm:$0xf]
      %v1217 = vld [vmem:[%s1205 + $0x2c] sm:$0xf]
      %v1218 = vld [vmem:[%s1205 + $0x30] sm:$0xf]
      %v1219 = vld [vmem:[%s1205 + $0x34] sm:$0xf]
      %v1220 = vld [vmem:[%s1205 + $0x38] sm:$0xf]
      %v1221 = vld [vmem:[%s1205 + $0x3c] sm:$0xf]
      %v1230 = vunpack.c.l.b16 %v698
      %v1231 = vunpack.c.l.b16 %v699
      %v1232 = vunpack.c.l.b16 %v700
      %v1233 = vunpack.c.l.b16 %v701
      %v1234 = vunpack.c.l.b16 %v702
      %v1235 = vunpack.c.l.b16 %v703
      %v1236 = vunpack.c.l.b16 %v704
      %v1237 = vunpack.c.l.b16 %v705
      %v1238 = vpack.c.b16 %v1231, %v1230
      %v1239 = vpack.c.b16 %v1233, %v1232
      %v1240 = vpack.c.b16 %v1235, %v1234
      %v1241 = vpack.c.b16 %v1237, %v1236
      %v1262 = vunpack.c.l.b16 %v1206
      %v1263 = vunpack.c.l.b16 %v1207
      %v1264 = vunpack.c.l.b16 %v1208
      %v1265 = vunpack.c.l.b16 %v1209
      %v1266 = vunpack.c.l.b16 %v1210
      %v1267 = vunpack.c.l.b16 %v1211
      %v1268 = vunpack.c.l.b16 %v1212
      %v1269 = vunpack.c.l.b16 %v1213
      %v1270 = vunpack.c.l.b16 %v1214
      %v1271 = vunpack.c.l.b16 %v1215
      %v1272 = vunpack.c.l.b16 %v1216
      %v1273 = vunpack.c.l.b16 %v1217
      %v1274 = vunpack.c.l.b16 %v1218
      %v1275 = vunpack.c.l.b16 %v1219
      %v1276 = vunpack.c.l.b16 %v1220
      %v1277 = vunpack.c.l.b16 %v1221
      %v1278 = vpack.c.b16 %v1263, %v1262
      %v1279 = vpack.c.b16 %v1265, %v1264
      %v1280 = vpack.c.b16 %v1267, %v1266
      %v1281 = vpack.c.b16 %v1269, %v1268
      %v1282 = vpack.c.b16 %v1271, %v1270
      %v1283 = vpack.c.b16 %v1273, %v1272
      %v1284 = vpack.c.b16 %v1275, %v1274
      %v1285 = vpack.c.b16 %v1277, %v1276
      %1294 = vmatpush.bf16.msra.mxu0 %v1285
      %1295 = vmatpush.bf16.msra.mxu0 %v1284
      %1296 = vmatpush.bf16.msra.mxu0 %v1283
      %1297 = vmatpush.bf16.msra.mxu0 %v1282
      %1298 = vmatpush.bf16.msra.mxu0 %v1281
      %1299 = vmatpush.bf16.msra.mxu0 %v1280
      %1300 = vmatpush.bf16.msra.mxu0 %v1279
      %1301 = vmatpush.bf16.msra.mxu0 %v1278
      %1302 = vmatmul.bf16.gmra.mxu0 %v1238
      %v1303 = vpop.f32.mrf.mxu0
      %v1304 = vadd.f32 0.0, %v1303
      %v1305 = vpop.f32.mrf.mxu0
      %v1306 = vadd.f32 0.0, %v1305
      %1307 = vmatmul.bf16.gmra.mxu0 %v1239
      %v1308 = vpop.f32.mrf.mxu0
      %v1309 = vadd.f32 0.0, %v1308
      %v1310 = vpop.f32.mrf.mxu0
      %v1311 = vadd.f32 0.0, %v1310
      %1312 = vmatmul.bf16.gmra.mxu0 %v1240
      %v1313 = vpop.f32.mrf.mxu0
      %v1314 = vadd.f32 0.0, %v1313
      %v1315 = vpop.f32.mrf.mxu0
      %v1316 = vadd.f32 0.0, %v1315
      %1317 = vmatmul.bf16.gmra.mxu0 %v1241
      %v1318 = vpop.f32.mrf.mxu0
      %v1319 = vadd.f32 0.0, %v1318
      %v1320 = vpop.f32.mrf.mxu0
      %v1321 = vadd.f32 0.0, %v1320
      %1322 = vdwg.mxu0
      %v1323 = vrot.slane %v1304, 7
      %v1324 = vrot.slane %v1306, 7
      %v1325 = vrot.slane %v1309, 7
      %v1326 = vrot.slane %v1311, 7
      %v1327 = vrot.slane %v1314, 7
      %v1328 = vrot.slane %v1316, 7
      %v1329 = vrot.slane %v1319, 7
      %v1330 = vrot.slane %v1321, 7
      %v1331 = vsel %vm928, %v1329, %v1330
      %v1332 = vsel %vm928, %v1328, %v1329
      %v1333 = vsel %vm928, %v1327, %v1328
      %v1334 = vsel %vm928, %v1326, %v1327
      %v1335 = vsel %vm928, %v1325, %v1326
      %v1336 = vsel %vm928, %v1324, %v1325
      %v1337 = vsel %vm928, %v1323, %v1324
      %v1338 = vsel %vm928, %v1330, %v1323
      %v1339 = vsel %vm795, %v1338, 0.0
      %v1340 = vsel %vm796, %v1337, 0.0
      %v1341 = vsel %vm797, %v1336, 0.0
      %v1342 = vsel %vm798, %v1335, 0.0
      %v1343 = vsel %vm799, %v1334, 0.0
      %v1344 = vsel %vm800, %v1333, 0.0
      %v1345 = vsel %vm801, %v1332, 0.0
      %v1346 = vsel %vm802, %v1331, 0.0
      %v1347 = vadd.f32 %v1197, %v1339
      %v1348 = vadd.f32 %v1198, %v1340
      %v1349 = vadd.f32 %v1199, %v1341
      %v1350 = vadd.f32 %v1200, %v1342
      %v1351 = vadd.f32 %v1201, %v1343
      %v1352 = vadd.f32 %v1202, %v1344
      %v1353 = vadd.f32 %v1203, %v1345
      %v1354 = vadd.f32 %v1204, %v1346
      %s1355 = scalar_lea.vmem %s3, 256
      %v1356 = vld [vmem:[%s1355] sm:$0xf]
      %v1357 = vld [vmem:[%s1355 + $0x4] sm:$0xf]
      %v1358 = vld [vmem:[%s1355 + $0x8] sm:$0xf]
      %v1359 = vld [vmem:[%s1355 + $0xc] sm:$0xf]
      %v1360 = vld [vmem:[%s1355 + $0x10] sm:$0xf]
      %v1361 = vld [vmem:[%s1355 + $0x14] sm:$0xf]
      %v1362 = vld [vmem:[%s1355 + $0x18] sm:$0xf]
      %v1363 = vld [vmem:[%s1355 + $0x1c] sm:$0xf]
      %v1364 = vld [vmem:[%s1355 + $0x20] sm:$0xf]
      %v1365 = vld [vmem:[%s1355 + $0x24] sm:$0xf]
      %v1366 = vld [vmem:[%s1355 + $0x28] sm:$0xf]
      %v1367 = vld [vmem:[%s1355 + $0x2c] sm:$0xf]
      %v1368 = vld [vmem:[%s1355 + $0x30] sm:$0xf]
      %v1369 = vld [vmem:[%s1355 + $0x34] sm:$0xf]
      %v1370 = vld [vmem:[%s1355 + $0x38] sm:$0xf]
      %v1371 = vld [vmem:[%s1355 + $0x3c] sm:$0xf]
      %v1380 = vunpack.c.l.b16 %v690
      %v1381 = vunpack.c.l.b16 %v691
      %v1382 = vunpack.c.l.b16 %v692
      %v1383 = vunpack.c.l.b16 %v693
      %v1384 = vunpack.c.l.b16 %v694
      %v1385 = vunpack.c.l.b16 %v695
      %v1386 = vunpack.c.l.b16 %v696
      %v1387 = vunpack.c.l.b16 %v697
      %v1388 = vpack.c.b16 %v1381, %v1380
      %v1389 = vpack.c.b16 %v1383, %v1382
      %v1390 = vpack.c.b16 %v1385, %v1384
      %v1391 = vpack.c.b16 %v1387, %v1386
      %v1412 = vunpack.c.l.b16 %v1356
      %v1413 = vunpack.c.l.b16 %v1357
      %v1414 = vunpack.c.l.b16 %v1358
      %v1415 = vunpack.c.l.b16 %v1359
      %v1416 = vunpack.c.l.b16 %v1360
      %v1417 = vunpack.c.l.b16 %v1361
      %v1418 = vunpack.c.l.b16 %v1362
      %v1419 = vunpack.c.l.b16 %v1363
      %v1420 = vunpack.c.l.b16 %v1364
      %v1421 = vunpack.c.l.b16 %v1365
      %v1422 = vunpack.c.l.b16 %v1366
      %v1423 = vunpack.c.l.b16 %v1367
      %v1424 = vunpack.c.l.b16 %v1368
      %v1425 = vunpack.c.l.b16 %v1369
      %v1426 = vunpack.c.l.b16 %v1370
      %v1427 = vunpack.c.l.b16 %v1371
      %v1428 = vpack.c.b16 %v1413, %v1412
      %v1429 = vpack.c.b16 %v1415, %v1414
      %v1430 = vpack.c.b16 %v1417, %v1416
      %v1431 = vpack.c.b16 %v1419, %v1418
      %v1432 = vpack.c.b16 %v1421, %v1420
      %v1433 = vpack.c.b16 %v1423, %v1422
      %v1434 = vpack.c.b16 %v1425, %v1424
      %v1435 = vpack.c.b16 %v1427, %v1426
      %1444 = vmatpush.bf16.msra.mxu0 %v1435
      %1445 = vmatpush.bf16.msra.mxu0 %v1434
      %1446 = vmatpush.bf16.msra.mxu0 %v1433
      %1447 = vmatpush.bf16.msra.mxu0 %v1432
      %1448 = vmatpush.bf16.msra.mxu0 %v1431
      %1449 = vmatpush.bf16.msra.mxu0 %v1430
      %1450 = vmatpush.bf16.msra.mxu0 %v1429
      %1451 = vmatpush.bf16.msra.mxu0 %v1428
      %1452 = vmatmul.bf16.gmra.mxu0 %v1388
      %v1453 = vpop.f32.mrf.mxu0
      %v1454 = vadd.f32 0.0, %v1453
      %v1455 = vpop.f32.mrf.mxu0
      %v1456 = vadd.f32 0.0, %v1455
      %1457 = vmatmul.bf16.gmra.mxu0 %v1389
      %v1458 = vpop.f32.mrf.mxu0
      %v1459 = vadd.f32 0.0, %v1458
      %v1460 = vpop.f32.mrf.mxu0
      %v1461 = vadd.f32 0.0, %v1460
      %1462 = vmatmul.bf16.gmra.mxu0 %v1390
      %v1463 = vpop.f32.mrf.mxu0
      %v1464 = vadd.f32 0.0, %v1463
      %v1465 = vpop.f32.mrf.mxu0
      %v1466 = vadd.f32 0.0, %v1465
      %1467 = vmatmul.bf16.gmra.mxu0 %v1391
      %v1468 = vpop.f32.mrf.mxu0
      %v1469 = vadd.f32 0.0, %v1468
      %v1470 = vpop.f32.mrf.mxu0
      %v1471 = vadd.f32 0.0, %v1470
      %1472 = vdwg.mxu0
      %v1473 = vadd.f32 %v1347, %v1454
      %v1474 = vadd.f32 %v1348, %v1456
      %v1475 = vadd.f32 %v1349, %v1459
      %v1476 = vadd.f32 %v1350, %v1461
      %v1477 = vadd.f32 %v1351, %v1464
      %v1478 = vadd.f32 %v1352, %v1466
      %v1479 = vadd.f32 %v1353, %v1469
      %v1480 = vadd.f32 %v1354, %v1471
      %s1481 = scalar_lea.vmem %s3, 320
      %v1482 = vld [vmem:[%s1481] sm:$0xf]
      %v1483 = vld [vmem:[%s1481 + $0x4] sm:$0xf]
      %v1484 = vld [vmem:[%s1481 + $0x8] sm:$0xf]
      %v1485 = vld [vmem:[%s1481 + $0xc] sm:$0xf]
      %v1486 = vld [vmem:[%s1481 + $0x10] sm:$0xf]
      %v1487 = vld [vmem:[%s1481 + $0x14] sm:$0xf]
      %v1488 = vld [vmem:[%s1481 + $0x18] sm:$0xf]
      %v1489 = vld [vmem:[%s1481 + $0x1c] sm:$0xf]
      %v1490 = vld [vmem:[%s1481 + $0x20] sm:$0xf]
      %v1491 = vld [vmem:[%s1481 + $0x24] sm:$0xf]
      %v1492 = vld [vmem:[%s1481 + $0x28] sm:$0xf]
      %v1493 = vld [vmem:[%s1481 + $0x2c] sm:$0xf]
      %v1494 = vld [vmem:[%s1481 + $0x30] sm:$0xf]
      %v1495 = vld [vmem:[%s1481 + $0x34] sm:$0xf]
      %v1496 = vld [vmem:[%s1481 + $0x38] sm:$0xf]
      %v1497 = vld [vmem:[%s1481 + $0x3c] sm:$0xf]
      %v1514 = vunpack.c.l.b16 %v1482
      %v1515 = vunpack.c.l.b16 %v1483
      %v1516 = vunpack.c.l.b16 %v1484
      %v1517 = vunpack.c.l.b16 %v1485
      %v1518 = vunpack.c.l.b16 %v1486
      %v1519 = vunpack.c.l.b16 %v1487
      %v1520 = vunpack.c.l.b16 %v1488
      %v1521 = vunpack.c.l.b16 %v1489
      %v1522 = vunpack.c.l.b16 %v1490
      %v1523 = vunpack.c.l.b16 %v1491
      %v1524 = vunpack.c.l.b16 %v1492
      %v1525 = vunpack.c.l.b16 %v1493
      %v1526 = vunpack.c.l.b16 %v1494
      %v1527 = vunpack.c.l.b16 %v1495
      %v1528 = vunpack.c.l.b16 %v1496
      %v1529 = vunpack.c.l.b16 %v1497
      %v1530 = vpack.c.b16 %v1515, %v1514
      %v1531 = vpack.c.b16 %v1517, %v1516
      %v1532 = vpack.c.b16 %v1519, %v1518
      %v1533 = vpack.c.b16 %v1521, %v1520
      %v1534 = vpack.c.b16 %v1523, %v1522
      %v1535 = vpack.c.b16 %v1525, %v1524
      %v1536 = vpack.c.b16 %v1527, %v1526
      %v1537 = vpack.c.b16 %v1529, %v1528
      %1546 = vmatpush.bf16.msra.mxu0 %v1537
      %1547 = vmatpush.bf16.msra.mxu0 %v1536
      %1548 = vmatpush.bf16.msra.mxu0 %v1535
      %1549 = vmatpush.bf16.msra.mxu0 %v1534
      %1550 = vmatpush.bf16.msra.mxu0 %v1533
      %1551 = vmatpush.bf16.msra.mxu0 %v1532
      %1552 = vmatpush.bf16.msra.mxu0 %v1531
      %1553 = vmatpush.bf16.msra.mxu0 %v1530
      %1554 = vmatmul.bf16.gmra.mxu0 %v1238
      %v1555 = vpop.f32.mrf.mxu0
      %v1556 = vadd.f32 0.0, %v1555
      %v1557 = vpop.f32.mrf.mxu0
      %v1558 = vadd.f32 0.0, %v1557
      %1559 = vmatmul.bf16.gmra.mxu0 %v1239
      %v1560 = vpop.f32.mrf.mxu0
      %v1561 = vadd.f32 0.0, %v1560
      %v1562 = vpop.f32.mrf.mxu0
      %v1563 = vadd.f32 0.0, %v1562
      %1564 = vmatmul.bf16.gmra.mxu0 %v1240
      %v1565 = vpop.f32.mrf.mxu0
      %v1566 = vadd.f32 0.0, %v1565
      %v1567 = vpop.f32.mrf.mxu0
      %v1568 = vadd.f32 0.0, %v1567
      %1569 = vmatmul.bf16.gmra.mxu0 %v1241
      %v1570 = vpop.f32.mrf.mxu0
      %v1571 = vadd.f32 0.0, %v1570
      %v1572 = vpop.f32.mrf.mxu0
      %v1573 = vadd.f32 0.0, %v1572
      %1574 = vdwg.mxu0
      %v1575 = vadd.f32 %v1473, %v1556
      %v1576 = vadd.f32 %v1474, %v1558
      %v1577 = vadd.f32 %v1475, %v1561
      %v1578 = vadd.f32 %v1476, %v1563
      %v1579 = vadd.f32 %v1477, %v1566
      %v1580 = vadd.f32 %v1478, %v1568
      %v1581 = vadd.f32 %v1479, %v1571
      %v1582 = vadd.f32 %v1480, %v1573
      %s1583 = scalar_lea.vmem %s3, 384
      %v1584 = vld [vmem:[%s1583] sm:$0xf]
      %v1585 = vld [vmem:[%s1583 + $0x4] sm:$0xf]
      %v1586 = vld [vmem:[%s1583 + $0x8] sm:$0xf]
      %v1587 = vld [vmem:[%s1583 + $0xc] sm:$0xf]
      %v1588 = vld [vmem:[%s1583 + $0x10] sm:$0xf]
      %v1589 = vld [vmem:[%s1583 + $0x14] sm:$0xf]
      %v1590 = vld [vmem:[%s1583 + $0x18] sm:$0xf]
      %v1591 = vld [vmem:[%s1583 + $0x1c] sm:$0xf]
      %v1592 = vld [vmem:[%s1583 + $0x20] sm:$0xf]
      %v1593 = vld [vmem:[%s1583 + $0x24] sm:$0xf]
      %v1594 = vld [vmem:[%s1583 + $0x28] sm:$0xf]
      %v1595 = vld [vmem:[%s1583 + $0x2c] sm:$0xf]
      %v1596 = vld [vmem:[%s1583 + $0x30] sm:$0xf]
      %v1597 = vld [vmem:[%s1583 + $0x34] sm:$0xf]
      %v1598 = vld [vmem:[%s1583 + $0x38] sm:$0xf]
      %v1599 = vld [vmem:[%s1583 + $0x3c] sm:$0xf]
      %v1616 = vunpack.c.l.b16 %v1584
      %v1617 = vunpack.c.l.b16 %v1585
      %v1618 = vunpack.c.l.b16 %v1586
      %v1619 = vunpack.c.l.b16 %v1587
      %v1620 = vunpack.c.l.b16 %v1588
      %v1621 = vunpack.c.l.b16 %v1589
      %v1622 = vunpack.c.l.b16 %v1590
      %v1623 = vunpack.c.l.b16 %v1591
      %v1624 = vunpack.c.l.b16 %v1592
      %v1625 = vunpack.c.l.b16 %v1593
      %v1626 = vunpack.c.l.b16 %v1594
      %v1627 = vunpack.c.l.b16 %v1595
      %v1628 = vunpack.c.l.b16 %v1596
      %v1629 = vunpack.c.l.b16 %v1597
      %v1630 = vunpack.c.l.b16 %v1598
      %v1631 = vunpack.c.l.b16 %v1599
      %v1632 = vpack.c.b16 %v1617, %v1616
      %v1633 = vpack.c.b16 %v1619, %v1618
      %v1634 = vpack.c.b16 %v1621, %v1620
      %v1635 = vpack.c.b16 %v1623, %v1622
      %v1636 = vpack.c.b16 %v1625, %v1624
      %v1637 = vpack.c.b16 %v1627, %v1626
      %v1638 = vpack.c.b16 %v1629, %v1628
      %v1639 = vpack.c.b16 %v1631, %v1630
      %1648 = vmatpush.bf16.msra.mxu0 %v1639
      %1649 = vmatpush.bf16.msra.mxu0 %v1638
      %1650 = vmatpush.bf16.msra.mxu0 %v1637
      %1651 = vmatpush.bf16.msra.mxu0 %v1636
      %1652 = vmatpush.bf16.msra.mxu0 %v1635
      %1653 = vmatpush.bf16.msra.mxu0 %v1634
      %1654 = vmatpush.bf16.msra.mxu0 %v1633
      %1655 = vmatpush.bf16.msra.mxu0 %v1632
      %1656 = vmatmul.bf16.gmra.mxu0 %v835
      %v1657 = vpop.f32.mrf.mxu0
      %v1658 = vadd.f32 0.0, %v1657
      %v1659 = vpop.f32.mrf.mxu0
      %v1660 = vadd.f32 0.0, %v1659
      %1661 = vmatmul.bf16.gmra.mxu0 %v836
      %v1662 = vpop.f32.mrf.mxu0
      %v1663 = vadd.f32 0.0, %v1662
      %v1664 = vpop.f32.mrf.mxu0
      %v1665 = vadd.f32 0.0, %v1664
      %1666 = vmatmul.bf16.gmra.mxu0 %v837
      %v1667 = vpop.f32.mrf.mxu0
      %v1668 = vadd.f32 0.0, %v1667
      %v1669 = vpop.f32.mrf.mxu0
      %v1670 = vadd.f32 0.0, %v1669
      %1671 = vmatmul.bf16.gmra.mxu0 %v838
      %v1672 = vpop.f32.mrf.mxu0
      %v1673 = vadd.f32 0.0, %v1672
      %v1674 = vpop.f32.mrf.mxu0
      %v1675 = vadd.f32 0.0, %v1674
      %1676 = vdwg.mxu0
      %v1677 = vrot.slane %v1658, 7
      %v1678 = vrot.slane %v1660, 7
      %v1679 = vrot.slane %v1663, 7
      %v1680 = vrot.slane %v1665, 7
      %v1681 = vrot.slane %v1668, 7
      %v1682 = vrot.slane %v1670, 7
      %v1683 = vrot.slane %v1673, 7
      %v1684 = vrot.slane %v1675, 7
      %v1685 = vsel %vm928, %v1683, %v1684
      %v1686 = vsel %vm928, %v1682, %v1683
      %v1687 = vsel %vm928, %v1681, %v1682
      %v1688 = vsel %vm928, %v1680, %v1681
      %v1689 = vsel %vm928, %v1679, %v1680
      %v1690 = vsel %vm928, %v1678, %v1679
      %v1691 = vsel %vm928, %v1677, %v1678
      %v1692 = vsel %vm928, %v1684, %v1677
      %v1693 = vsel %vm795, %v1692, 0.0
      %v1694 = vsel %vm796, %v1691, 0.0
      %v1695 = vsel %vm797, %v1690, 0.0
      %v1696 = vsel %vm798, %v1689, 0.0
      %v1697 = vsel %vm799, %v1688, 0.0
      %v1698 = vsel %vm800, %v1687, 0.0
      %v1699 = vsel %vm801, %v1686, 0.0
      %v1700 = vsel %vm802, %v1685, 0.0
      %v1701 = vadd.f32 %v1575, %v1693
      %v1702 = vadd.f32 %v1576, %v1694
      %v1703 = vadd.f32 %v1577, %v1695
      %v1704 = vadd.f32 %v1578, %v1696
      %v1705 = vadd.f32 %v1579, %v1697
      %v1706 = vadd.f32 %v1580, %v1698
      %v1707 = vadd.f32 %v1581, %v1699
      %v1708 = vadd.f32 %v1582, %v1700
      %s1709 = scalar_lea.vmem %s3, 448
      %v1710 = vld [vmem:[%s1709] sm:$0xf]
      %v1711 = vld [vmem:[%s1709 + $0x4] sm:$0xf]
      %v1712 = vld [vmem:[%s1709 + $0x8] sm:$0xf]
      %v1713 = vld [vmem:[%s1709 + $0xc] sm:$0xf]
      %v1714 = vld [vmem:[%s1709 + $0x10] sm:$0xf]
      %v1715 = vld [vmem:[%s1709 + $0x14] sm:$0xf]
      %v1716 = vld [vmem:[%s1709 + $0x18] sm:$0xf]
      %v1717 = vld [vmem:[%s1709 + $0x1c] sm:$0xf]
      %v1718 = vld [vmem:[%s1709 + $0x20] sm:$0xf]
      %v1719 = vld [vmem:[%s1709 + $0x24] sm:$0xf]
      %v1720 = vld [vmem:[%s1709 + $0x28] sm:$0xf]
      %v1721 = vld [vmem:[%s1709 + $0x2c] sm:$0xf]
      %v1722 = vld [vmem:[%s1709 + $0x30] sm:$0xf]
      %v1723 = vld [vmem:[%s1709 + $0x34] sm:$0xf]
      %v1724 = vld [vmem:[%s1709 + $0x38] sm:$0xf]
      %v1725 = vld [vmem:[%s1709 + $0x3c] sm:$0xf]
      %v1742 = vunpack.c.l.b16 %v1710
      %v1743 = vunpack.c.l.b16 %v1711
      %v1744 = vunpack.c.l.b16 %v1712
      %v1745 = vunpack.c.l.b16 %v1713
      %v1746 = vunpack.c.l.b16 %v1714
      %v1747 = vunpack.c.l.b16 %v1715
      %v1748 = vunpack.c.l.b16 %v1716
      %v1749 = vunpack.c.l.b16 %v1717
      %v1750 = vunpack.c.l.b16 %v1718
      %v1751 = vunpack.c.l.b16 %v1719
      %v1752 = vunpack.c.l.b16 %v1720
      %v1753 = vunpack.c.l.b16 %v1721
      %v1754 = vunpack.c.l.b16 %v1722
      %v1755 = vunpack.c.l.b16 %v1723
      %v1756 = vunpack.c.l.b16 %v1724
      %v1757 = vunpack.c.l.b16 %v1725
      %v1758 = vpack.c.b16 %v1743, %v1742
      %v1759 = vpack.c.b16 %v1745, %v1744
      %v1760 = vpack.c.b16 %v1747, %v1746
      %v1761 = vpack.c.b16 %v1749, %v1748
      %v1762 = vpack.c.b16 %v1751, %v1750
      %v1763 = vpack.c.b16 %v1753, %v1752
      %v1764 = vpack.c.b16 %v1755, %v1754
      %v1765 = vpack.c.b16 %v1757, %v1756
      %1774 = vmatpush.bf16.msra.mxu0 %v1765
      %1775 = vmatpush.bf16.msra.mxu0 %v1764
      %1776 = vmatpush.bf16.msra.mxu0 %v1763
      %1777 = vmatpush.bf16.msra.mxu0 %v1762
      %1778 = vmatpush.bf16.msra.mxu0 %v1761
      %1779 = vmatpush.bf16.msra.mxu0 %v1760
      %1780 = vmatpush.bf16.msra.mxu0 %v1759
      %1781 = vmatpush.bf16.msra.mxu0 %v1758
      %1782 = vmatmul.bf16.gmra.mxu0 %v994
      %v1783 = vpop.f32.mrf.mxu0
      %v1784 = vadd.f32 0.0, %v1783
      %v1785 = vpop.f32.mrf.mxu0
      %v1786 = vadd.f32 0.0, %v1785
      %1787 = vmatmul.bf16.gmra.mxu0 %v995
      %v1788 = vpop.f32.mrf.mxu0
      %v1789 = vadd.f32 0.0, %v1788
      %v1790 = vpop.f32.mrf.mxu0
      %v1791 = vadd.f32 0.0, %v1790
      %1792 = vmatmul.bf16.gmra.mxu0 %v996
      %v1793 = vpop.f32.mrf.mxu0
      %v1794 = vadd.f32 0.0, %v1793
      %v1795 = vpop.f32.mrf.mxu0
      %v1796 = vadd.f32 0.0, %v1795
      %1797 = vmatmul.bf16.gmra.mxu0 %v997
      %v1798 = vpop.f32.mrf.mxu0
      %v1799 = vadd.f32 0.0, %v1798
      %v1800 = vpop.f32.mrf.mxu0
      %v1801 = vadd.f32 0.0, %v1800
      %1802 = vdwg.mxu0
      %v1803 = vadd.f32 %v1701, %v1784
      %v1804 = vadd.f32 %v1702, %v1786
      %v1805 = vadd.f32 %v1703, %v1789
      %v1806 = vadd.f32 %v1704, %v1791
      %v1807 = vadd.f32 %v1705, %v1794
      %v1808 = vadd.f32 %v1706, %v1796
      %v1809 = vadd.f32 %v1707, %v1799
      %v1810 = vadd.f32 %v1708, %v1801
      %s1811 = scalar_lea.vmem %s3, 512
      %v1812 = vld [vmem:[%s1811] sm:$0xf]
      %v1813 = vld [vmem:[%s1811 + $0x4] sm:$0xf]
      %v1814 = vld [vmem:[%s1811 + $0x8] sm:$0xf]
      %v1815 = vld [vmem:[%s1811 + $0xc] sm:$0xf]
      %v1816 = vld [vmem:[%s1811 + $0x10] sm:$0xf]
      %v1817 = vld [vmem:[%s1811 + $0x14] sm:$0xf]
      %v1818 = vld [vmem:[%s1811 + $0x18] sm:$0xf]
      %v1819 = vld [vmem:[%s1811 + $0x1c] sm:$0xf]
      %v1820 = vld [vmem:[%s1811 + $0x20] sm:$0xf]
      %v1821 = vld [vmem:[%s1811 + $0x24] sm:$0xf]
      %v1822 = vld [vmem:[%s1811 + $0x28] sm:$0xf]
      %v1823 = vld [vmem:[%s1811 + $0x2c] sm:$0xf]
      %v1824 = vld [vmem:[%s1811 + $0x30] sm:$0xf]
      %v1825 = vld [vmem:[%s1811 + $0x34] sm:$0xf]
      %v1826 = vld [vmem:[%s1811 + $0x38] sm:$0xf]
      %v1827 = vld [vmem:[%s1811 + $0x3c] sm:$0xf]
      %v1844 = vunpack.c.l.b16 %v1812
      %v1845 = vunpack.c.l.b16 %v1813
      %v1846 = vunpack.c.l.b16 %v1814
      %v1847 = vunpack.c.l.b16 %v1815
      %v1848 = vunpack.c.l.b16 %v1816
      %v1849 = vunpack.c.l.b16 %v1817
      %v1850 = vunpack.c.l.b16 %v1818
      %v1851 = vunpack.c.l.b16 %v1819
      %v1852 = vunpack.c.l.b16 %v1820
      %v1853 = vunpack.c.l.b16 %v1821
      %v1854 = vunpack.c.l.b16 %v1822
      %v1855 = vunpack.c.l.b16 %v1823
      %v1856 = vunpack.c.l.b16 %v1824
      %v1857 = vunpack.c.l.b16 %v1825
      %v1858 = vunpack.c.l.b16 %v1826
      %v1859 = vunpack.c.l.b16 %v1827
      %v1860 = vpack.c.b16 %v1845, %v1844
      %v1861 = vpack.c.b16 %v1847, %v1846
      %v1862 = vpack.c.b16 %v1849, %v1848
      %v1863 = vpack.c.b16 %v1851, %v1850
      %v1864 = vpack.c.b16 %v1853, %v1852
      %v1865 = vpack.c.b16 %v1855, %v1854
      %v1866 = vpack.c.b16 %v1857, %v1856
      %v1867 = vpack.c.b16 %v1859, %v1858
      %1876 = vmatpush.bf16.msra.mxu0 %v1867
      %1877 = vmatpush.bf16.msra.mxu0 %v1866
      %1878 = vmatpush.bf16.msra.mxu0 %v1865
      %1879 = vmatpush.bf16.msra.mxu0 %v1864
      %1880 = vmatpush.bf16.msra.mxu0 %v1863
      %1881 = vmatpush.bf16.msra.mxu0 %v1862
      %1882 = vmatpush.bf16.msra.mxu0 %v1861
      %1883 = vmatpush.bf16.msra.mxu0 %v1860
      %1884 = vmatmul.bf16.gmra.mxu0 %v835
      %v1885 = vpop.f32.mrf.mxu0
      %v1886 = vadd.f32 0.0, %v1885
      %v1887 = vpop.f32.mrf.mxu0
      %v1888 = vadd.f32 0.0, %v1887
      %1889 = vmatmul.bf16.gmra.mxu0 %v836
      %v1890 = vpop.f32.mrf.mxu0
      %v1891 = vadd.f32 0.0, %v1890
      %v1892 = vpop.f32.mrf.mxu0
      %v1893 = vadd.f32 0.0, %v1892
      %1894 = vmatmul.bf16.gmra.mxu0 %v837
      %v1895 = vpop.f32.mrf.mxu0
      %v1896 = vadd.f32 0.0, %v1895
      %v1897 = vpop.f32.mrf.mxu0
      %v1898 = vadd.f32 0.0, %v1897
      %1899 = vmatmul.bf16.gmra.mxu0 %v838
      %v1900 = vpop.f32.mrf.mxu0
      %v1901 = vadd.f32 0.0, %v1900
      %v1902 = vpop.f32.mrf.mxu0
      %v1903 = vadd.f32 0.0, %v1902
      %1904 = vdwg.mxu0
      %v1905 = vadd.f32 %v1803, %v1886
      %v1906 = vadd.f32 %v1804, %v1888
      %v1907 = vadd.f32 %v1805, %v1891
      %v1908 = vadd.f32 %v1806, %v1893
      %v1909 = vadd.f32 %v1807, %v1896
      %v1910 = vadd.f32 %v1808, %v1898
      %v1911 = vadd.f32 %v1809, %v1901
      %v1912 = vadd.f32 %v1810, %v1903
      %v1913 = vld [vmem:[%s4] sm:$0x1]
      %v1915 = vperm.slane %v1913, 0
      %v1917 = vadd.f32 %v1905, %v1915
      %v1918 = vadd.f32 %v1906, %v1915
      %v1919 = vadd.f32 %v1907, %v1915
      %v1920 = vadd.f32 %v1908, %v1915
      %v1921 = vadd.f32 %v1909, %v1915
      %v1922 = vadd.f32 %v1910, %v1915
      %v1923 = vadd.f32 %v1911, %v1915
      %v1924 = vadd.f32 %v1912, %v1915
      %v1925 = vmax.f32 %v1917, 0.0
      %v1926 = vmax.f32 %v1918, 0.0
      %v1927 = vmax.f32 %v1919, 0.0
      %v1928 = vmax.f32 %v1920, 0.0
      %v1929 = vmax.f32 %v1921, 0.0
      %v1930 = vmax.f32 %v1922, 0.0
      %v1931 = vmax.f32 %v1923, 0.0
      %v1932 = vmax.f32 %v1924, 0.0
      %v1933 = vpack.c.bf16 %v1926, %v1925
      %v1934 = vpack.c.bf16 %v1928, %v1927
      %v1935 = vpack.c.bf16 %v1930, %v1929
      %v1936 = vpack.c.bf16 %v1932, %v1931
      %v1937 = vld [vmem:[%s5] sm:$0xf]
      %v1938 = vld [vmem:[%s5 + $0x4] sm:$0xf]
      %v1939 = vld [vmem:[%s5 + $0x8] sm:$0xf]
      %v1940 = vld [vmem:[%s5 + $0xc] sm:$0xf]
      %v1941 = vld [vmem:[%s5 + $0x10] sm:$0xf]
      %v1942 = vld [vmem:[%s5 + $0x14] sm:$0xf]
      %v1943 = vld [vmem:[%s5 + $0x18] sm:$0xf]
      %v1944 = vld [vmem:[%s5 + $0x1c] sm:$0xf]
      %v1945 = vld [vmem:[%s5 + $0x20] sm:$0xf]
      %v1946 = vld [vmem:[%s5 + $0x24] sm:$0xf]
      %v1947 = vld [vmem:[%s5 + $0x28] sm:$0xf]
      %v1948 = vld [vmem:[%s5 + $0x2c] sm:$0xf]
      %v1949 = vld [vmem:[%s5 + $0x30] sm:$0xf]
      %v1950 = vld [vmem:[%s5 + $0x34] sm:$0xf]
      %v1951 = vld [vmem:[%s5 + $0x38] sm:$0xf]
      %v1952 = vld [vmem:[%s5 + $0x3c] sm:$0xf]
      %v1953 = vld [vmem:[%s6] sm:$0x1]
      %v1955 = vperm.slane %v1953, 0
      %v1973 = vunpack.c.l.b16 %v1937
      %v1974 = vunpack.c.l.b16 %v1938
      %v1975 = vunpack.c.l.b16 %v1939
      %v1976 = vunpack.c.l.b16 %v1940
      %v1977 = vunpack.c.l.b16 %v1941
      %v1978 = vunpack.c.l.b16 %v1942
      %v1979 = vunpack.c.l.b16 %v1943
      %v1980 = vunpack.c.l.b16 %v1944
      %v1981 = vunpack.c.l.b16 %v1945
      %v1982 = vunpack.c.l.b16 %v1946
      %v1983 = vunpack.c.l.b16 %v1947
      %v1984 = vunpack.c.l.b16 %v1948
      %v1985 = vunpack.c.l.b16 %v1949
      %v1986 = vunpack.c.l.b16 %v1950
      %v1987 = vunpack.c.l.b16 %v1951
      %v1988 = vunpack.c.l.b16 %v1952
      %v1989 = vpack.c.b16 %v1974, %v1973
      %v1990 = vpack.c.b16 %v1976, %v1975
      %v1991 = vpack.c.b16 %v1978, %v1977
      %v1992 = vpack.c.b16 %v1980, %v1979
      %v1993 = vpack.c.b16 %v1982, %v1981
      %v1994 = vpack.c.b16 %v1984, %v1983
      %v1995 = vpack.c.b16 %v1986, %v1985
      %v1996 = vpack.c.b16 %v1988, %v1987
      %2005 = vmatpush.bf16.msra.mxu0 %v1996
      %2006 = vmatpush.bf16.msra.mxu0 %v1995
      %2007 = vmatpush.bf16.msra.mxu0 %v1994
      %2008 = vmatpush.bf16.msra.mxu0 %v1993
      %2009 = vmatpush.bf16.msra.mxu0 %v1992
      %2010 = vmatpush.bf16.msra.mxu0 %v1991
      %2011 = vmatpush.bf16.msra.mxu0 %v1990
      %2012 = vmatpush.bf16.msra.mxu0 %v1989
      %2013 = vmatmul.bf16.gmra.mxu0 %v1933
      %v2014 = vpop.f32.mrf.mxu0
      %v2015 = vadd.f32 %v1955, %v2014
      %v2016 = vpop.f32.mrf.mxu0
      %v2017 = vadd.f32 %v1955, %v2016
      %2018 = vmatmul.bf16.gmra.mxu0 %v1934
      %v2019 = vpop.f32.mrf.mxu0
      %v2020 = vadd.f32 %v1955, %v2019
      %v2021 = vpop.f32.mrf.mxu0
      %v2022 = vadd.f32 %v1955, %v2021
      %2023 = vmatmul.bf16.gmra.mxu0 %v1935
      %v2024 = vpop.f32.mrf.mxu0
      %v2025 = vadd.f32 %v1955, %v2024
      %v2026 = vpop.f32.mrf.mxu0
      %v2027 = vadd.f32 %v1955, %v2026
      %2028 = vmatmul.bf16.gmra.mxu0 %v1936
      %v2029 = vpop.f32.mrf.mxu0
      %v2030 = vadd.f32 %v1955, %v2029
      %v2031 = vpop.f32.mrf.mxu0
      %v2032 = vadd.f32 %v1955, %v2031
      %2033 = vdwg.mxu0
      %v2034 = vld [vmem:[%s7] sm:$0xf]
      %v2035 = vld [vmem:[%s7 + $0x4] sm:$0xf]
      %v2036 = vld [vmem:[%s7 + $0x8] sm:$0xf]
      %v2037 = vld [vmem:[%s7 + $0xc] sm:$0xf]
      %v2038 = vld [vmem:[%s7 + $0x10] sm:$0xf]
      %v2039 = vld [vmem:[%s7 + $0x14] sm:$0xf]
      %v2040 = vld [vmem:[%s7 + $0x18] sm:$0xf]
      %v2041 = vld [vmem:[%s7 + $0x1c] sm:$0xf]
      %v2042 = vld [vmem:[%s7 + $0x20] sm:$0xf]
      %v2043 = vld [vmem:[%s7 + $0x24] sm:$0xf]
      %v2044 = vld [vmem:[%s7 + $0x28] sm:$0xf]
      %v2045 = vld [vmem:[%s7 + $0x2c] sm:$0xf]
      %v2046 = vld [vmem:[%s7 + $0x30] sm:$0xf]
      %v2047 = vld [vmem:[%s7 + $0x34] sm:$0xf]
      %v2048 = vld [vmem:[%s7 + $0x38] sm:$0xf]
      %v2049 = vld [vmem:[%s7 + $0x3c] sm:$0xf]
      %v2050 = vld [vmem:[%s8] sm:$0x1]
      %v2052 = vperm.slane %v2050, 0
      %v2070 = vunpack.c.l.b16 %v2034
      %v2071 = vunpack.c.l.b16 %v2035
      %v2072 = vunpack.c.l.b16 %v2036
      %v2073 = vunpack.c.l.b16 %v2037
      %v2074 = vunpack.c.l.b16 %v2038
      %v2075 = vunpack.c.l.b16 %v2039
      %v2076 = vunpack.c.l.b16 %v2040
      %v2077 = vunpack.c.l.b16 %v2041
      %v2078 = vunpack.c.l.b16 %v2042
      %v2079 = vunpack.c.l.b16 %v2043
      %v2080 = vunpack.c.l.b16 %v2044
      %v2081 = vunpack.c.l.b16 %v2045
      %v2082 = vunpack.c.l.b16 %v2046
      %v2083 = vunpack.c.l.b16 %v2047
      %v2084 = vunpack.c.l.b16 %v2048
      %v2085 = vunpack.c.l.b16 %v2049
      %v2086 = vpack.c.b16 %v2071, %v2070
      %v2087 = vpack.c.b16 %v2073, %v2072
      %v2088 = vpack.c.b16 %v2075, %v2074
      %v2089 = vpack.c.b16 %v2077, %v2076
      %v2090 = vpack.c.b16 %v2079, %v2078
      %v2091 = vpack.c.b16 %v2081, %v2080
      %v2092 = vpack.c.b16 %v2083, %v2082
      %v2093 = vpack.c.b16 %v2085, %v2084
      %2102 = vmatpush.bf16.msra.mxu0 %v2093
      %2103 = vmatpush.bf16.msra.mxu0 %v2092
      %2104 = vmatpush.bf16.msra.mxu0 %v2091
      %2105 = vmatpush.bf16.msra.mxu0 %v2090
      %2106 = vmatpush.bf16.msra.mxu0 %v2089
      %2107 = vmatpush.bf16.msra.mxu0 %v2088
      %2108 = vmatpush.bf16.msra.mxu0 %v2087
      %2109 = vmatpush.bf16.msra.mxu0 %v2086
      %2110 = vmatmul.bf16.gmra.mxu0 %v489
      %v2111 = vpop.f32.mrf.mxu0
      %v2112 = vadd.f32 %v2052, %v2111
      %v2113 = vpop.f32.mrf.mxu0
      %v2114 = vadd.f32 %v2052, %v2113
      %2115 = vmatmul.bf16.gmra.mxu0 %v490
      %v2116 = vpop.f32.mrf.mxu0
      %v2117 = vadd.f32 %v2052, %v2116
      %v2118 = vpop.f32.mrf.mxu0
      %v2119 = vadd.f32 %v2052, %v2118
      %2120 = vmatmul.bf16.gmra.mxu0 %v491
      %v2121 = vpop.f32.mrf.mxu0
      %v2122 = vadd.f32 %v2052, %v2121
      %v2123 = vpop.f32.mrf.mxu0
      %v2124 = vadd.f32 %v2052, %v2123
      %2125 = vmatmul.bf16.gmra.mxu0 %v492
      %v2126 = vpop.f32.mrf.mxu0
      %v2127 = vadd.f32 %v2052, %v2126
      %v2128 = vpop.f32.mrf.mxu0
      %v2129 = vadd.f32 %v2052, %v2128
      %2130 = vdwg.mxu0
      %v2131 = vadd.f32 %v2112, %v2015
      %v2132 = vadd.f32 %v2114, %v2017
      %v2133 = vadd.f32 %v2117, %v2020
      %v2134 = vadd.f32 %v2119, %v2022
      %v2135 = vadd.f32 %v2122, %v2025
      %v2136 = vadd.f32 %v2124, %v2027
      %v2137 = vadd.f32 %v2127, %v2030
      %v2138 = vadd.f32 %v2129, %v2032
      %2139 = vst [vmem:[%s372] sm:$0xff] %v2131
      %2140 = vst [vmem:[%s372 + $0x8] sm:$0xff] %v2132
      %2141 = vst [vmem:[%s372 + $0x10] sm:$0xff] %v2133
      %2142 = vst [vmem:[%s372 + $0x18] sm:$0xff] %v2134
      %2143 = vst [vmem:[%s372 + $0x20] sm:$0xff] %v2135
      %2144 = vst [vmem:[%s372 + $0x28] sm:$0xff] %v2136
      %2145 = vst [vmem:[%s372 + $0x30] sm:$0xff] %v2137
      %2146 = vst [vmem:[%s372 + $0x38] sm:$0xff] %v2138
      %v2147 = vmax.f32 %v2112, 0.0
      %v2148 = vmax.f32 %v2114, 0.0
      %v2149 = vmax.f32 %v2117, 0.0
      %v2150 = vmax.f32 %v2119, 0.0
      %v2151 = vmax.f32 %v2122, 0.0
      %v2152 = vmax.f32 %v2124, 0.0
      %v2153 = vmax.f32 %v2127, 0.0
      %v2154 = vmax.f32 %v2129, 0.0
      %2155 = vst [vmem:[%s367] sm:$0xff] %v2147
      %2156 = vst [vmem:[%s367 + $0x8] sm:$0xff] %v2148
      %2157 = vst [vmem:[%s367 + $0x10] sm:$0xff] %v2149
      %2158 = vst [vmem:[%s367 + $0x18] sm:$0xff] %v2150
      %2159 = vst [vmem:[%s367 + $0x20] sm:$0xff] %v2151
      %2160 = vst [vmem:[%s367 + $0x28] sm:$0xff] %v2152
      %2161 = vst [vmem:[%s367 + $0x30] sm:$0xff] %v2153
      %2162 = vst [vmem:[%s367 + $0x38] sm:$0xff] %v2154
      %p2163 = scmp.lt.s32.totalorder %s22, 1
      %s2164 = scalar_select %p2163, %s22, 1
      %s2165 = smul.addr %s2164, 8
      %s2166 = smul.addr %s2165, 8
      %s2167 = scalar_lea.vmem %s9, %s2166
      %p2168 = scmp.lt.s32.totalorder %s22, 1
      %s2169 = scalar_select %p2168, %s22, 1
      %s2170 = smul.addr %s2169, 8
      %s2171 = smul.addr %s2170, 8
      %s2172 = scalar_lea.vmem %s10, %s2171
      // Predicated region
      $region57: #{bottleneck_residual_block.1} parent=55 // pred_check
        %p2173 = pneg %p234
      $region58: #{bottleneck_residual_block.1} parent=55 // pred_check_branch
        %2175 = sbr.rel (%p2173) target = $region60
      $region59: #{bottleneck_residual_block.1} parent=55 // pred_region
        _
      $region60: #{bottleneck_residual_block.1} parent=55 // pred_fallthru
        _
      // Predicated region
      $region61: #{bottleneck_residual_block.1} parent=55 // pred_check
        %p2176 = pneg %p260
      $region62: #{bottleneck_residual_block.1} parent=55 // pred_check_branch
        %2178 = sbr.rel (%p2176) target = $region64
      $region63: #{bottleneck_residual_block.1} parent=55 // pred_region
        _
      $region64: #{bottleneck_residual_block.1} parent=55 // pred_fallthru
        _
    $region56: #{bottleneck_residual_block.1} parent=5 // pred_fallthru
      _
    %p2179 = scmp.le.s32.totalorder 2, %s17
    // Predicated region
    $region65: #{bottleneck_residual_block.1} parent=5 // pred_check
      %p2180 = pneg %p2179
    $region66: #{bottleneck_residual_block.1} parent=5 // pred_check_branch
      %2182 = sbr.rel (%p2180) target = $region68
    $region67: #{bottleneck_residual_block.1} parent=5 // pred_region
      %s2183 = ssub.s32 %s17, 2
      // Predicated region
      $region69: #{bottleneck_residual_block.1} parent=67 // pred_check
        %p2184 = pneg %p240
      $region70: #{bottleneck_residual_block.1} parent=67 // pred_check_branch
        %2186 = sbr.rel (%p2184) target = $region72
      $region71: #{bottleneck_residual_block.1} parent=67 // pred_region
        %p2187 = scmp.lt.s32.totalorder %s23, 1
        %s2188 = scalar_select %p2187, %s23, 1
        %s2189 = smul.addr %s2188, 8
        %s2190 = smul.addr %s2189, 8
        %s2191 = scalar_lea.vmem %s9, %s2190
      $region72: #{bottleneck_residual_block.1} parent=67 // pred_fallthru
        _
      // Predicated region
      $region73: #{bottleneck_residual_block.1} parent=67 // pred_check
        %p2192 = pneg %p266
      $region74: #{bottleneck_residual_block.1} parent=67 // pred_check_branch
        %2194 = sbr.rel (%p2192) target = $region76
      $region75: #{bottleneck_residual_block.1} parent=67 // pred_region
        %p2195 = scmp.lt.s32.totalorder %s23, 1
        %s2196 = scalar_select %p2195, %s23, 1
        %s2197 = smul.addr %s2196, 8
        %s2198 = smul.addr %s2197, 8
        %s2199 = scalar_lea.vmem %s10, %s2198
      $region76: #{bottleneck_residual_block.1} parent=67 // pred_fallthru
        _
    $region68: #{bottleneck_residual_block.1} parent=5 // pred_fallthru
      _
  $region6: #{bottleneck_residual_block.1} parent=0 // loop_footer
    %s21 = sadd.s32 1, %s17
  $region7: #{bottleneck_residual_block.1} parent=0 // loop_footer_branch
    %16 = sbr.rel target = $region3
  $region8: #{bottleneck_residual_block.1} parent=0 // loop_exit
    _

</llo_original>
